<compile_context>
chip_gen: v5e
topology: v5e:2x2
jax: 0.10.0
libtpu: 0.0.40
codegen_flags: <defaults>
</compile_context>

<pallas_src>
import functools
from typing import NamedTuple

import jax
import jax.numpy as jnp
import numpy as np
from jax.experimental import pallas as pl
from jax.experimental.pallas import tpu as pltpu

LANE = 128
SUB = 8
SMALL_BATCH_MAX = 128        # <= this: single-shot call, everything VMEM-resident
MAX_BATCH_TILE = 256         # grid path: fills 256-wide MXU rows on v6e/v7x
VMEM_LIMIT = 32 * 1024 * 1024

# ---------------------- packed slab layout (static) --------------------------
# Row offsets into the stacked [1024, 128] bf16 weight slab:
_ROW_R3, _ROW_R4, _ROW_S1, _ROW_S2, _ROW_H1, _ROW_H2, _ROW_H3 = (
    0, 256, 384, 512, 640, 768, 896)
_W128_ROWS = 1024
# Lane offsets into the packed [1, 1152] f32 bias row:
_B_R2, _B_R3, _B_R4, _B_S1, _B_S2, _B_H1, _B_H2, _B_H3 = (
    0, 256, 384, 512, 640, 768, 896, 1024)
_BREST_COLS = 1152
# Lane placement for the concat-as-add trick (must match the kernels):
_STATE_LANE = 64     # state2 outputs -> lanes 64..79 of the 128-lane tile
_ACTION_LANE = 80    # critic action2 outputs -> lanes 80..95
_ACT1_LANE = 4       # critic action1 outputs -> lanes 4..7 (next to state1 0..3)


def _rup(x, m):
    return ((x + m - 1) // m) * m


# ------------------------------ kernel math ----------------------------------
def _relu_bf16(x):
    # Post-ReLU activations carried in bf16 (MXU-native); padded lanes stay
    # exactly 0 because ReLU(0) == 0.
    return jnp.maximum(x, 0.0).astype(jnp.bfloat16)


def _dense(x_bf16, w_bf16, b_f32):
    # bf16 x bf16 on the MXU, f32 accumulation, f32 bias add on the VPU.
    return jnp.dot(x_bf16, w_bf16, preferred_element_type=jnp.float32) + b_f32


def _radar_tail(h1, w_r2_ref, w128_ref, b_ref):
    """radar2 -> radar3 -> radar4 given h1 = relu(radar1(xr)), bf16 [bt, 512]."""
    h2 = _relu_bf16(_dense(h1, w_r2_ref[...], b_ref[:, _B_R2:_B_R2 + 256]))
    h3 = _relu_bf16(_dense(h2, w128_ref[_ROW_R3:_ROW_R3 + 256, :],
                           b_ref[:, _B_R3:_B_R3 + 128]))
    # real outputs in lanes 0..63, lanes 64..127 exactly zero
    return _relu_bf16(_dense(h3, w128_ref[_ROW_R4:_ROW_R4 + 128, :],
                             b_ref[:, _B_R4:_B_R4 + 128]))


def _state_branch(xsa, w128_ref, b_ref):
    """state1->state2 (actor) or block-diag state1+action1 -> state2+action2
    (critic).  Output lanes: state at 64..79, action at 80..95, rest zero."""
    s1 = _relu_bf16(_dense(xsa, w128_ref[_ROW_S1:_ROW_S1 + 128, :],
                           b_ref[:, _B_S1:_B_S1 + 128]))
    return _relu_bf16(_dense(s1, w128_ref[_ROW_S2:_ROW_S2 + 128, :],
                             b_ref[:, _B_S2:_B_S2 + 128]))


def _head(pre, w128_ref, b_ref):
    h1 = _relu_bf16(_dense(pre, w128_ref[_ROW_H1:_ROW_H1 + 128, :],
                           b_ref[:, _B_H1:_B_H1 + 128]))
    h2 = _relu_bf16(_dense(h1, w128_ref[_ROW_H2:_ROW_H2 + 128, :],
                           b_ref[:, _B_H2:_B_H2 + 128]))
    return _dense(h2, w128_ref[_ROW_H3:_ROW_H3 + 128, :],
                  b_ref[:, _B_H3:_B_H3 + 128])


def _actor_from_radar(radar, xsa, w128_ref, b_ref):
    # radar(lanes 0..63) + state(lanes 64..79) == torch.cat((radar, state), 1):
    # every other lane of both operands is exactly zero by construction.
    pre = radar + _state_branch(xsa, w128_ref, b_ref)
    out = jnp.tanh(_head(pre, w128_ref, b_ref))
    return (out + 1.0) * 0.5


def _critic_from_radar(radar, xsa, w128_ref, b_ref):
    # radar(0..63) + state(64..79) + action(80..95) == cat((radar,state,action),1)
    cat = radar + _state_branch(xsa, w128_ref, b_ref)
    return _head(cat, w128_ref, b_ref)


def _actor_kernel(xr_ref, xsa_ref, w_r1_ref, b_r1_ref, w_r2_ref, w128_ref,
                  b_ref, out_ref):
    h1 = _relu_bf16(_dense(xr_ref[...], w_r1_ref[...], b_r1_ref[...]))
    radar = _radar_tail(h1, w_r2_ref, w128_ref, b_ref)
    out_ref[...] = _actor_from_radar(radar, xsa_ref[...], w128_ref, b_ref)


def _critic_kernel(xr_ref, xsa_ref, w_r1_ref, b_r1_ref, w_r2_ref, w128_ref,
                   b_ref, out_ref):
    h1 = _relu_bf16(_dense(xr_ref[...], w_r1_ref[...], b_r1_ref[...]))
    radar = _radar_tail(h1, w_r2_ref, w128_ref, b_ref)
    out_ref[...] = _critic_from_radar(radar, xsa_ref[...], w128_ref, b_ref)


def _fused_kernel(xr_ref, xsa_ref, w_r1_ref, b_r1_ref,
                  aw_r2_ref, aw128_ref, ab_ref,
                  cw_r2_ref, cw128_ref, cb_ref,
                  a_out_ref, c_out_ref):
    # Shared radar1: actor & critic radar1 weights concatenated along the
    # output dim -> ONE [bt,in] x [in,1024] matmul, split with static slices.
    h1 = _relu_bf16(_dense(xr_ref[...], w_r1_ref[...], b_r1_ref[...]))
    xsa = xsa_ref[...]
    a_radar = _radar_tail(h1[:, 0:512], aw_r2_ref, aw128_ref, ab_ref)
    c_radar = _radar_tail(h1[:, 512:1024], cw_r2_ref, cw128_ref, cb_ref)
    a_out_ref[...] = _actor_from_radar(a_radar, xsa, aw128_ref, ab_ref)
    c_out_ref[...] = _critic_from_radar(c_radar, xsa, cw128_ref, cb_ref)


# --------------------------- parameter handling -------------------------------
def _init_linear(key, fan_in, fan_out):
    # mimic torch.nn.Linear default init: U(-1/sqrt(fan_in), 1/sqrt(fan_in))
    kw, kb = jax.random.split(key)
    bound = 1.0 / float(np.sqrt(fan_in))
    w = jax.random.uniform(kw, (fan_in, fan_out), jnp.float32, -bound, bound)
    b = jax.random.uniform(kb, (fan_out,), jnp.float32, -bound, bound)
    return w, b


def init_params(key, in_dim_1, in_dim_2, out_dim, net_type):
    keys = jax.random.split(key, 16)
    p = {"type": net_type}
    p["radar1"] = _init_linear(keys[0], in_dim_1, 512)
    p["radar2"] = _init_linear(keys[1], 512, 256)
    p["radar3"] = _init_linear(keys[2], 256, 128)
    p["radar4"] = _init_linear(keys[3], 128, 64)
    p["state1"] = _init_linear(keys[4], in_dim_2, 4)
    p["state2"] = _init_linear(keys[5], 4, 16)
    if net_type == "actor":
        p["actor1"] = _init_linear(keys[6], 80, 64)
        p["actor2"] = _init_linear(keys[7], 64, 32)
        p["actor3"] = _init_linear(keys[8], 32, out_dim)
    elif net_type == "critic":
        p["action1"] = _init_linear(keys[9], 1, 4)
        p["action2"] = _init_linear(keys[10], 4, 16)
        p["critic1"] = _init_linear(keys[11], 96, 64)
        p["critic2"] = _init_linear(keys[12], 64, 32)
        p["critic3"] = _init_linear(keys[13], 32, out_dim)
    else:
        raise ValueError("type must be 'actor' or 'critic'")
    return p


class NetMeta(NamedTuple):
    net_type: str
    in_dim_1: int
    in_dim_2: int
    act_dim: int
    out_dim: int


class FusedMeta(NamedTuple):
    in_dim_1: int
    in_dim_2: int
    act_dim: int
    actor_out_dim: int
    critic_out_dim: int


def _put(slab, a, r, c):
    a = jnp.asarray(a, jnp.float32)
    return slab.at[r:r + a.shape[0], c:c + a.shape[1]].set(a)


def _put_row(row, b, c):
    b = jnp.asarray(b, jnp.float32)
    return row.at[0, c:c + b.shape[0]].set(b)


def prepare_params(p):
    """One-time packing of all weights into 3 bf16 slabs + 2 f32 bias rows.
    The offsets used here MUST stay in sync with the _ROW_*/_B_*/*_LANE
    constants the kernels slice with: the concat-as-add trick is exact only
    because every padded weight column / bias entry is zero and ReLU(0)==0."""
    t = p["type"]
    w_r1_raw, b_r1_raw = p["radar1"]
    in_dim_1 = w_r1_raw.shape[0]
    in_dim_2 = p["state1"][0].shape[0]
    P1 = _rup(in_dim_1, LANE)

    w_r1 = _put(jnp.zeros((P1, 512), jnp.float32), w_r1_raw, 0, 0)
    b_r1 = _put_row(jnp.zeros((1, 512), jnp.float32), b_r1_raw, 0)
    w_r2 = jnp.asarray(p["radar2"][0], jnp.float32)            # already [512,256]

    w128 = jnp.zeros((_W128_ROWS, LANE), jnp.float32)
    bias = jnp.zeros((1, _BREST_COLS), jnp.float32)

    w128 = _put(w128, p["radar3"][0], _ROW_R3, 0)
    w128 = _put(w128, p["radar4"][0], _ROW_R4, 0)
    bias = _put_row(bias, p["radar2"][1], _B_R2)
    bias = _put_row(bias, p["radar3"][1], _B_R3)
    bias = _put_row(bias, p["radar4"][1], _B_R4)

    ws1, bs1 = p["state1"]
    ws2, bs2 = p["state2"]
    assert in_dim_2 <= LANE
    w128 = _put(w128, ws1, _ROW_S1, 0)                 # outputs -> lanes 0..3
    bias = _put_row(bias, bs1, _B_S1)
    w128 = _put(w128, ws2, _ROW_S2, _STATE_LANE)       # outputs -> lanes 64..79
    bias = _put_row(bias, bs2, _B_S2 + _STATE_LANE)

    act_dim = 0
    if t == "critic":
        wa1, ba1 = p["action1"]
        wa2, ba2 = p["action2"]
        act_dim = wa1.shape[0]
        assert in_dim_2 + act_dim <= LANE
        # block-diagonal action1 (input lanes in_dim_2.., output lanes 4..7)
        # and action2 (output lanes 80..95) next to the state branch
        w128 = _put(w128, wa1, _ROW_S1 + in_dim_2, _ACT1_LANE)
        bias = _put_row(bias, ba1, _B_S1 + _ACT1_LANE)
        w128 = _put(w128, wa2, _ROW_S2 + _ACT1_LANE, _ACTION_LANE)
        bias = _put_row(bias, ba2, _B_S2 + _ACTION_LANE)
        h1n, h2n, h3n = "critic1", "critic2", "critic3"
    elif t == "actor":
        h1n, h2n, h3n = "actor1", "actor2", "actor3"
    else:
        raise ValueError("type must be 'actor' or 'critic'")

    w128 = _put(w128, p[h1n][0], _ROW_H1, 0)
    bias = _put_row(bias, p[h1n][1], _B_H1)
    w128 = _put(w128, p[h2n][0], _ROW_H2, 0)
    bias = _put_row(bias, p[h2n][1], _B_H2)
    w128 = _put(w128, p[h3n][0], _ROW_H3, 0)
    bias = _put_row(bias, p[h3n][1], _B_H3)
    out_dim = p[h3n][0].shape[1]
    assert out_dim <= LANE

    meta = NetMeta(t, in_dim_1, in_dim_2, act_dim, out_dim)
    weights = (w_r1.astype(jnp.bfloat16), b_r1, w_r2.astype(jnp.bfloat16),
               w128.astype(jnp.bfloat16), bias)
    return meta, weights


def prepare_fused_params(actor_prep, critic_prep):
    """Pack both nets for the fused kernel; radar1 weights/biases are
    concatenated along the output dim so the fused kernel runs them as ONE
    matmul (actor cols 0:512, critic cols 512:1024)."""
    a_meta, a_w = actor_prep
    c_meta, c_w = critic_prep
    assert a_meta.net_type == "actor" and c_meta.net_type == "critic"
    assert a_meta.in_dim_1 == c_meta.in_dim_1
    assert a_meta.in_dim_2 == c_meta.in_dim_2
    w_r1 = jnp.concatenate([a_w[0], c_w[0]], axis=1)     # [P1, 1024] bf16
    b_r1 = jnp.concatenate([a_w[1], c_w[1]], axis=1)     # [1, 1024] f32
    weights = (w_r1, b_r1, a_w[2], a_w[3], a_w[4], c_w[2], c_w[3], c_w[4])
    meta = FusedMeta(a_meta.in_dim_1, a_meta.in_dim_2, c_meta.act_dim,
                     a_meta.out_dim, c_meta.out_dim)
    return meta, weights


def _bf16_roundtrip_params(p):
    """Reference params with the same bf16 weight precision the kernel stores."""
    q = {"type": p["type"]}
    for k, v in p.items():
        if k == "type":
            continue
        w, b = v
        q[k] = (w.astype(jnp.bfloat16).astype(jnp.float32), b)
    return q


# ------------------------------- pallas call -----------------------------------
def _batch_plan(B):
    """Returns (padded_rows, batch_tile, use_grid)."""
    if B <= SMALL_BATCH_MAX:
        # Single spec-free invocation: no row padding, everything VMEM-resident
        # once, no redundant double buffering.
        return B, B, False
    # Grid path: always >= 2 steps so dimension_semantics=("parallel",) can be
    # split across both TensorCores on v7x; tile up to MAX_BATCH_TILE rows to
    # fill the 256-wide MXU row dim (v6e/v7x) and amortize ~0.35us/step.
    bt = min(MAX_BATCH_TILE, _rup((B + 1) // 2, SUB))
    Bp = _rup(B, bt)
    return Bp, bt, True


def _pallas_forward(kernel, args, out_shape, Bp, bt, use_grid, n_act=2):
    multi_out = isinstance(out_shape, (tuple, list))
    if not use_grid:
        # Explicit VMEM residency for every operand (predictable fast path).
        vmem = pl.BlockSpec(memory_space=pltpu.MemorySpace.VMEM)
        out_specs = tuple(vmem for _ in out_shape) if multi_out else vmem
        return pl.pallas_call(
            kernel, out_shape=out_shape,
            in_specs=[vmem] * len(args), out_specs=out_specs,
            compiler_params=pltpu.CompilerParams(vmem_limit_bytes=VMEM_LIMIT),
        )(*args)

    grid = (Bp // bt,)
    in_specs = []
    for idx, a in enumerate(args):
        if idx < n_act:      # activations: tiled over batch
            in_specs.append(pl.BlockSpec((bt, a.shape[1]), lambda i: (i, 0)))
        else:                # weight slabs / bias rows: same resident block
            in_specs.append(pl.BlockSpec(a.shape, lambda i: (0, 0)))

    def _ospec(s):
        return pl.BlockSpec((bt, s.shape[1]), lambda i: (i, 0))

    out_specs = tuple(_ospec(s) for s in out_shape) if multi_out else _ospec(out_shape)
    return pl.pallas_call(
        kernel, out_shape=out_shape, grid=grid,
        in_specs=in_specs, out_specs=out_specs,
        compiler_params=pltpu.CompilerParams(
            dimension_semantics=("parallel",), vmem_limit_bytes=VMEM_LIMIT),
    )(*args)


def _pad_radar(obs_radar, Bp, P1):
    x = obs_radar.astype(jnp.bfloat16)
    B, D = x.shape
    if B == Bp and D == P1:
        return x                       # already aligned: skip the pad entirely
    return jnp.pad(x, ((0, Bp - B), (0, P1 - D)))


def _pack_state_action(obs_state, obs_action, Bp, in_dim_2, act_dim):
    B = obs_state.shape[0]
    x = obs_state.astype(jnp.bfloat16)
    if obs_action is not None and act_dim > 0:
        x = jnp.concatenate([x, obs_action.astype(jnp.bfloat16)], axis=1)
    return jnp.pad(x, ((0, Bp - B), (0, LANE - x.shape[1])))


# ------------------------------- wrappers --------------------------------------
@functools.partial(jax.jit, static_argnums=(0,))
def _forward_single(meta, weights, obs_radar, obs_state, obs_action):
    B = obs_radar.shape[0]
    Bp, bt, use_grid = _batch_plan(B)
    P1 = _rup(meta.in_dim_1, LANE)
    xr = _pad_radar(obs_radar, Bp, P1)
    xsa = _pack_state_action(obs_state, obs_action, Bp, meta.in_dim_2, meta.act_dim)
    kernel = _actor_kernel if meta.net_type == "actor" else _critic_kernel
    out_shape = jax.ShapeDtypeStruct((Bp, LANE), jnp.float32)
    out = _pallas_forward(kernel, [xr, xsa] + list(weights), out_shape,
                          Bp, bt, use_grid)
    return out[:B, :meta.out_dim]


@functools.partial(jax.jit, static_argnums=(0,))
def _forward_fused(meta, weights, obs_radar, obs_state, obs_action):
    B = obs_radar.shape[0]
    Bp, bt, use_grid = _batch_plan(B)
    P1 = _rup(meta.in_dim_1, LANE)
    xr = _pad_radar(obs_radar, Bp, P1)
    xsa = _pack_state_action(obs_state, obs_action, Bp, meta.in_dim_2, meta.act_dim)
    out_shape = (jax.ShapeDtypeStruct((Bp, LANE), jnp.float32),
                 jax.ShapeDtypeStruct((Bp, LANE), jnp.float32))
    a_out, c_out = _pallas_forward(_fused_kernel, [xr, xsa] + list(weights),
                                   out_shape, Bp, bt, use_grid)
    return a_out[:B, :meta.actor_out_dim], c_out[:B, :meta.critic_out_dim]


def feedforward_nn_forward(prep, obs_radar, obs_state, obs_action=None):
    """Forward of one FeedForwardNN (actor or critic), matching the PyTorch module."""
    meta, weights = prep
    if meta.net_type == "critic" and obs_action is None:
        raise ValueError("critic forward requires obs_action")
    return _forward_single(meta, weights, obs_radar, obs_state, obs_action)


def fused_actor_critic_forward(fused_prep, obs_radar, obs_state, obs_action):
    """Both networks in one pallas_call (shared launch, shared input DMA,
    shared radar1 matmul)."""
    meta, weights = fused_prep
    return _forward_fused(meta, weights, obs_radar, obs_state, obs_action)


# ------------------------- pure-JAX reference ---------------------------------
def reference_forward(params, obs_radar, obs_state, obs_action=None):
    relu = jax.nn.relu

    def lin(name, x):
        w, b = params[name]
        return x @ w + b

    radar = relu(lin("radar4", relu(lin("radar3", relu(lin("radar2",
                 relu(lin("radar1", obs_radar))))))))
    state = relu(lin("state2", relu(lin("state1", obs_state))))
    pre = jnp.concatenate([radar, state], axis=1)
    if params["type"] == "actor":
        a1 = relu(lin("actor1", pre))
        a2 = relu(lin("actor2", a1))
        out = jnp.tanh(lin("actor3", a2))
        return (out + 1.0) / 2.0
    else:
        action = relu(lin("action2", relu(lin("action1", obs_action))))
        cat = jnp.concatenate([pre, action], axis=1)
        c1 = relu(lin("critic1", cat))
        c2 = relu(lin("critic2", c1))
        return lin("critic3", c2)


# --------------------------------- main ---------------------------------------
if __name__ == "__main__":
    key = jax.random.PRNGKey(0)
    in_dim_1, in_dim_2, out_dim = 128, 4, 2
    B = 2

    k1, k2, k3, kpa, kpc, kbig = jax.random.split(key, 6)
    obs_radar = jax.random.normal(k1, (B, in_dim_1), jnp.float32)
    obs_state = jax.random.normal(k2, (B, in_dim_2), jnp.float32)
    obs_action = jax.random.normal(k3, (B, 1), jnp.float32)

    actor_params = init_params(kpa, in_dim_1, in_dim_2, out_dim, "actor")
    critic_params = init_params(kpc, in_dim_1, in_dim_2, 1, "critic")

    # one-time weight packing (padding / slab packing / bf16), off the hot path
    actor_prep = prepare_params(actor_params)
    critic_prep = prepare_params(critic_params)
    fused_prep = prepare_fused_params(actor_prep, critic_prep)

    # per-module forwards (PyTorch FeedForwardNN semantics)
    actor_out = feedforward_nn_forward(actor_prep, obs_radar, obs_state)
    critic_out = feedforward_nn_forward(critic_prep, obs_radar, obs_state, obs_action)

    # fused actor + critic in one pallas_call
    fused_a, fused_c = fused_actor_critic_forward(fused_prep, obs_radar,
                                                  obs_state, obs_action)
    jax.block_until_ready((actor_out, critic_out, fused_a, fused_c))

    assert actor_out.shape == (B, out_dim)
    assert critic_out.shape == (B, 1)

    # reference with the same bf16 weight precision the kernel stores
    ref_actor_params = _bf16_roundtrip_params(actor_params)
    ref_critic_params = _bf16_roundtrip_params(critic_params)
    ref_a = reference_forward(ref_actor_params, obs_radar, obs_state)
    ref_c = reference_forward(ref_critic_params, obs_radar, obs_state, obs_action)

    np.testing.assert_allclose(np.asarray(actor_out), np.asarray(ref_a),
                               atol=5e-3, rtol=2e-2)
    np.testing.assert_allclose(np.asarray(critic_out), np.asarray(ref_c),
                               atol=5e-3, rtol=2e-2)
    np.testing.assert_allclose(np.asarray(fused_a), np.asarray(ref_a),
                               atol=5e-3, rtol=2e-2)
    np.testing.assert_allclose(np.asarray(fused_c), np.asarray(ref_c),
                               atol=5e-3, rtol=2e-2)

    # larger batch exercises the batch-tiled "parallel" grid path (>= 2 steps)
    Bbig = 384
    kb1, kb2, kb3 = jax.random.split(kbig, 3)
    big_radar = jax.random.normal(kb1, (Bbig, in_dim_1), jnp.float32)
    big_state = jax.random.normal(kb2, (Bbig, in_dim_2), jnp.float32)
    big_action = jax.random.normal(kb3, (Bbig, 1), jnp.float32)
    big_a, big_c = fused_actor_critic_forward(fused_prep, big_radar,
                                              big_state, big_action)
    jax.block_until_ready((big_a, big_c))
    ref_big_a = reference_forward(ref_actor_params, big_radar, big_state)
    ref_big_c = reference_forward(ref_critic_params, big_radar, big_state, big_action)
    np.testing.assert_allclose(np.asarray(big_a), np.asarray(ref_big_a),
                               atol=5e-3, rtol=2e-2)
    np.testing.assert_allclose(np.asarray(big_c), np.asarray(ref_big_c),
                               atol=5e-3, rtol=2e-2)

    print("KERNEL_OK")
</pallas_src>

<mosaic_0001>
module attributes {stable_mosaic.version = 11 : i64} {
  func.func @_actor_kernel(%arg0: memref<2x128xbf16, #tpu.memory_space<vmem>>, %arg1: memref<2x128xbf16, #tpu.memory_space<vmem>>, %arg2: memref<128x512xbf16, #tpu.memory_space<vmem>>, %arg3: memref<1x512xf32, #tpu.memory_space<vmem>>, %arg4: memref<512x256xbf16, #tpu.memory_space<vmem>>, %arg5: memref<1024x128xbf16, #tpu.memory_space<vmem>>, %arg6: memref<1x1152xf32, #tpu.memory_space<vmem>>, %arg7: memref<2x128xf32, #tpu.memory_space<vmem>>) attributes {dimension_semantics = [], scalar_prefetch = 0 : i64, scratch_operands = 0 : i64, tpu.core_type = #tpu.core_type<tc>} {
    %c0 = arith.constant 0 : index
    %c0_0 = arith.constant 0 : index
    %0 = vector.load %arg0[%c0, %c0_0] : memref<2x128xbf16, #tpu.memory_space<vmem>>, vector<2x128xbf16>
    %c0_1 = arith.constant 0 : index
    %c0_2 = arith.constant 0 : index
    %1 = vector.load %arg2[%c0_1, %c0_2] : memref<128x512xbf16, #tpu.memory_space<vmem>>, vector<128x512xbf16>
    %c0_3 = arith.constant 0 : index
    %c0_4 = arith.constant 0 : index
    %2 = vector.load %arg3[%c0_3, %c0_4] : memref<1x512xf32, #tpu.memory_space<vmem>>, vector<1x512xf32>
    %cst = arith.constant dense<0.000000e+00> : vector<2x512xf32>
    %3 = tpu.matmul %0, %1, %cst {dimension_numbers = #tpu.dot_dimension_numbers<[1], [0], [0], [1], [0, 0, 1, 1], [], []>} : vector<2x128xbf16>, vector<128x512xbf16>, vector<2x512xf32> -> vector<2x512xf32>
    %4 = vector.broadcast %2 : vector<1x512xf32> to vector<2x512xf32>
    %5 = arith.addf %3, %4 : vector<2x512xf32>
    %cst_5 = arith.constant 0.000000e+00 : f32
    %6 = vector.broadcast %cst_5 : f32 to vector<2x512xf32>
    %7 = arith.maximumf %5, %6 : vector<2x512xf32>
    %8 = arith.truncf %7 : vector<2x512xf32> to vector<2x512xbf16>
    %c0_6 = arith.constant 0 : index
    %c0_7 = arith.constant 0 : index
    %9 = vector.load %arg4[%c0_6, %c0_7] : memref<512x256xbf16, #tpu.memory_space<vmem>>, vector<512x256xbf16>
    %c0_8 = arith.constant 0 : index
    %c0_9 = arith.constant 0 : index
    %10 = vector.load %arg6[%c0_8, %c0_9] : memref<1x1152xf32, #tpu.memory_space<vmem>>, vector<1x256xf32>
    %cst_10 = arith.constant dense<0.000000e+00> : vector<2x256xf32>
    %11 = tpu.matmul %8, %9, %cst_10 {dimension_numbers = #tpu.dot_dimension_numbers<[1], [0], [0], [1], [0, 0, 1, 1], [], []>} : vector<2x512xbf16>, vector<512x256xbf16>, vector<2x256xf32> -> vector<2x256xf32>
    %12 = vector.broadcast %10 : vector<1x256xf32> to vector<2x256xf32>
    %13 = arith.addf %11, %12 : vector<2x256xf32>
    %cst_11 = arith.constant 0.000000e+00 : f32
    %14 = vector.broadcast %cst_11 : f32 to vector<2x256xf32>
    %15 = arith.maximumf %13, %14 : vector<2x256xf32>
    %16 = arith.truncf %15 : vector<2x256xf32> to vector<2x256xbf16>
    %c0_12 = arith.constant 0 : index
    %c0_13 = arith.constant 0 : index
    %17 = vector.load %arg5[%c0_12, %c0_13] : memref<1024x128xbf16, #tpu.memory_space<vmem>>, vector<256x128xbf16>
    %c0_14 = arith.constant 0 : index
    %c256 = arith.constant 256 : index
    %18 = vector.load %arg6[%c0_14, %c256] : memref<1x1152xf32, #tpu.memory_space<vmem>>, vector<1x128xf32>
    %cst_15 = arith.constant dense<0.000000e+00> : vector<2x128xf32>
    %19 = tpu.matmul %16, %17, %cst_15 {dimension_numbers = #tpu.dot_dimension_numbers<[1], [0], [0], [1], [0, 0, 1, 1], [], []>} : vector<2x256xbf16>, vector<256x128xbf16>, vector<2x128xf32> -> vector<2x128xf32>
    %20 = vector.broadcast %18 : vector<1x128xf32> to vector<2x128xf32>
    %21 = arith.addf %19, %20 : vector<2x128xf32>
    %cst_16 = arith.constant 0.000000e+00 : f32
    %22 = vector.broadcast %cst_16 : f32 to vector<2x128xf32>
    %23 = arith.maximumf %21, %22 : vector<2x128xf32>
    %24 = arith.truncf %23 : vector<2x128xf32> to vector<2x128xbf16>
    %c256_17 = arith.constant 256 : index
    %c0_18 = arith.constant 0 : index
    %25 = vector.load %arg5[%c256_17, %c0_18] : memref<1024x128xbf16, #tpu.memory_space<vmem>>, vector<128x128xbf16>
    %c0_19 = arith.constant 0 : index
    %c384 = arith.constant 384 : index
    %26 = vector.load %arg6[%c0_19, %c384] : memref<1x1152xf32, #tpu.memory_space<vmem>>, vector<1x128xf32>
    %cst_20 = arith.constant dense<0.000000e+00> : vector<2x128xf32>
    %27 = tpu.matmul %24, %25, %cst_20 {dimension_numbers = #tpu.dot_dimension_numbers<[1], [0], [0], [1], [0, 0, 1, 1], [], []>} : vector<2x128xbf16>, vector<128x128xbf16>, vector<2x128xf32> -> vector<2x128xf32>
    %28 = vector.broadcast %26 : vector<1x128xf32> to vector<2x128xf32>
    %29 = arith.addf %27, %28 : vector<2x128xf32>
    %cst_21 = arith.constant 0.000000e+00 : f32
    %30 = vector.broadcast %cst_21 : f32 to vector<2x128xf32>
    %31 = arith.maximumf %29, %30 : vector<2x128xf32>
    %32 = arith.truncf %31 : vector<2x128xf32> to vector<2x128xbf16>
    %c0_22 = arith.constant 0 : index
    %c0_23 = arith.constant 0 : index
    %33 = vector.load %arg1[%c0_22, %c0_23] : memref<2x128xbf16, #tpu.memory_space<vmem>>, vector<2x128xbf16>
    %c384_24 = arith.constant 384 : index
    %c0_25 = arith.constant 0 : index
    %34 = vector.load %arg5[%c384_24, %c0_25] : memref<1024x128xbf16, #tpu.memory_space<vmem>>, vector<128x128xbf16>
    %c0_26 = arith.constant 0 : index
    %c512 = arith.constant 512 : index
    %35 = vector.load %arg6[%c0_26, %c512] : memref<1x1152xf32, #tpu.memory_space<vmem>>, vector<1x128xf32>
    %cst_27 = arith.constant dense<0.000000e+00> : vector<2x128xf32>
    %36 = tpu.matmul %33, %34, %cst_27 {dimension_numbers = #tpu.dot_dimension_numbers<[1], [0], [0], [1], [0, 0, 1, 1], [], []>} : vector<2x128xbf16>, vector<128x128xbf16>, vector<2x128xf32> -> vector<2x128xf32>
    %37 = vector.broadcast %35 : vector<1x128xf32> to vector<2x128xf32>
    %38 = arith.addf %36, %37 : vector<2x128xf32>
    %cst_28 = arith.constant 0.000000e+00 : f32
    %39 = vector.broadcast %cst_28 : f32 to vector<2x128xf32>
    %40 = arith.maximumf %38, %39 : vector<2x128xf32>
    %41 = arith.truncf %40 : vector<2x128xf32> to vector<2x128xbf16>
    %c512_29 = arith.constant 512 : index
    %c0_30 = arith.constant 0 : index
    %42 = vector.load %arg5[%c512_29, %c0_30] : memref<1024x128xbf16, #tpu.memory_space<vmem>>, vector<128x128xbf16>
    %c0_31 = arith.constant 0 : index
    %c640 = arith.constant 640 : index
    %43 = vector.load %arg6[%c0_31, %c640] : memref<1x1152xf32, #tpu.memory_space<vmem>>, vector<1x128xf32>
    %cst_32 = arith.constant dense<0.000000e+00> : vector<2x128xf32>
    %44 = tpu.matmul %41, %42, %cst_32 {dimension_numbers = #tpu.dot_dimension_numbers<[1], [0], [0], [1], [0, 0, 1, 1], [], []>} : vector<2x128xbf16>, vector<128x128xbf16>, vector<2x128xf32> -> vector<2x128xf32>
    %45 = vector.broadcast %43 : vector<1x128xf32> to vector<2x128xf32>
    %46 = arith.addf %44, %45 : vector<2x128xf32>
    %cst_33 = arith.constant 0.000000e+00 : f32
    %47 = vector.broadcast %cst_33 : f32 to vector<2x128xf32>
    %48 = arith.maximumf %46, %47 : vector<2x128xf32>
    %49 = arith.truncf %48 : vector<2x128xf32> to vector<2x128xbf16>
    %50 = arith.addf %32, %49 : vector<2x128xbf16>
    %c640_34 = arith.constant 640 : index
    %c0_35 = arith.constant 0 : index
    %51 = vector.load %arg5[%c640_34, %c0_35] : memref<1024x128xbf16, #tpu.memory_space<vmem>>, vector<128x128xbf16>
    %c0_36 = arith.constant 0 : index
    %c768 = arith.constant 768 : index
    %52 = vector.load %arg6[%c0_36, %c768] : memref<1x1152xf32, #tpu.memory_space<vmem>>, vector<1x128xf32>
    %cst_37 = arith.constant dense<0.000000e+00> : vector<2x128xf32>
    %53 = tpu.matmul %50, %51, %cst_37 {dimension_numbers = #tpu.dot_dimension_numbers<[1], [0], [0], [1], [0, 0, 1, 1], [], []>} : vector<2x128xbf16>, vector<128x128xbf16>, vector<2x128xf32> -> vector<2x128xf32>
    %54 = vector.broadcast %52 : vector<1x128xf32> to vector<2x128xf32>
    %55 = arith.addf %53, %54 : vector<2x128xf32>
    %cst_38 = arith.constant 0.000000e+00 : f32
    %56 = vector.broadcast %cst_38 : f32 to vector<2x128xf32>
    %57 = arith.maximumf %55, %56 : vector<2x128xf32>
    %58 = arith.truncf %57 : vector<2x128xf32> to vector<2x128xbf16>
    %c768_39 = arith.constant 768 : index
    %c0_40 = arith.constant 0 : index
    %59 = vector.load %arg5[%c768_39, %c0_40] : memref<1024x128xbf16, #tpu.memory_space<vmem>>, vector<128x128xbf16>
    %c0_41 = arith.constant 0 : index
    %c896 = arith.constant 896 : index
    %60 = vector.load %arg6[%c0_41, %c896] : memref<1x1152xf32, #tpu.memory_space<vmem>>, vector<1x128xf32>
    %cst_42 = arith.constant dense<0.000000e+00> : vector<2x128xf32>
    %61 = tpu.matmul %58, %59, %cst_42 {dimension_numbers = #tpu.dot_dimension_numbers<[1], [0], [0], [1], [0, 0, 1, 1], [], []>} : vector<2x128xbf16>, vector<128x128xbf16>, vector<2x128xf32> -> vector<2x128xf32>
    %62 = vector.broadcast %60 : vector<1x128xf32> to vector<2x128xf32>
    %63 = arith.addf %61, %62 : vector<2x128xf32>
    %cst_43 = arith.constant 0.000000e+00 : f32
    %64 = vector.broadcast %cst_43 : f32 to vector<2x128xf32>
    %65 = arith.maximumf %63, %64 : vector<2x128xf32>
    %66 = arith.truncf %65 : vector<2x128xf32> to vector<2x128xbf16>
    %c896_44 = arith.constant 896 : index
    %c0_45 = arith.constant 0 : index
    %67 = vector.load %arg5[%c896_44, %c0_45] : memref<1024x128xbf16, #tpu.memory_space<vmem>>, vector<128x128xbf16>
    %c0_46 = arith.constant 0 : index
    %c1024 = arith.constant 1024 : index
    %68 = vector.load %arg6[%c0_46, %c1024] : memref<1x1152xf32, #tpu.memory_space<vmem>>, vector<1x128xf32>
    %cst_47 = arith.constant dense<0.000000e+00> : vector<2x128xf32>
    %69 = tpu.matmul %66, %67, %cst_47 {dimension_numbers = #tpu.dot_dimension_numbers<[1], [0], [0], [1], [0, 0, 1, 1], [], []>} : vector<2x128xbf16>, vector<128x128xbf16>, vector<2x128xf32> -> vector<2x128xf32>
    %70 = vector.broadcast %68 : vector<1x128xf32> to vector<2x128xf32>
    %71 = arith.addf %69, %70 : vector<2x128xf32>
    %72 = math.tanh %71 : vector<2x128xf32>
    %cst_48 = arith.constant 1.000000e+00 : f32
    %73 = vector.broadcast %cst_48 : f32 to vector<2x128xf32>
    %74 = arith.addf %72, %73 : vector<2x128xf32>
    %cst_49 = arith.constant 5.000000e-01 : f32
    %75 = vector.broadcast %cst_49 : f32 to vector<2x128xf32>
    %76 = arith.mulf %74, %75 : vector<2x128xf32>
    %c0_50 = arith.constant 0 : index
    %c0_51 = arith.constant 0 : index
    %77 = vector.load %arg7[%c0_50, %c0_51] : memref<2x128xf32, #tpu.memory_space<vmem>>, vector<2x128xf32>
    tpu.vector_store %arg7[%c0_50, %c0_51], %76 {strides = array<i32>} : memref<2x128xf32, #tpu.memory_space<vmem>>, vector<2x128xf32>,
    return
  }
}

</mosaic_0001>

<llo_original>
// kernel: _forward_single.1
$region0: #{_forward_single.1}
  #allocation0 [shape = 'u32[]', space=smem, size = 0x4, offset = 0x4, fixed_abs, tag = 'smem constant byte address 0x4 - core index']
  #allocation1 [shape = 'u32[72,128]{1,0:T(1,128)}', space=vmem, size = 0x9000, scoped, tag = 'internal scratch']
  %s0 = inlined_call_operand.vmem [shape: bf16[2,128], index: 0, kind: input, shape index: {}]
  %s1 = inlined_call_operand.vmem [shape: bf16[2,128], index: 1, kind: input, shape index: {}]
  %s2 = inlined_call_operand.hbm [shape: bf16[128,512], index: 2, kind: input, shape index: {}]
  %s3 = inlined_call_operand.vmem [shape: f32[1,512], index: 3, kind: input, shape index: {}]
  %s4 = inlined_call_operand.hbm [shape: bf16[512,256], index: 4, kind: input, shape index: {}]
  %s5 = inlined_call_operand.hbm [shape: bf16[1024,128], index: 5, kind: input, shape index: {}]
  %s6 = inlined_call_operand.hbm [shape: f32[1,1152], index: 6, kind: input, shape index: {}]
  %s7 = inlined_call_operand.hbm [shape: f32[2,128], index: 7, kind: output, shape index: {}]
  %s8 = sld [smem:[#allocation0]]
  $region54: #{_forward_single.1} parent=0
    _
  %s10 = ssub.s32 1, %s8
  %s11 = scalar_select 0, %s10, %s8
  $region1: #{_forward_single.1} parent=0
    #allocation2 [shape = 'u8[131072]{0}', space=vmem, size = 0x20000, scoped, tag = 'input window, operand 2, single buffered']
    #allocation3 [shape = 's32[1]{0}', space=sflag, size = 0x4, scoped, tag = 'scoped memory for _forward_single.1']
    #allocation4 [shape = 's32[1]{0}', space=sflag, size = 0x4, scoped, tag = 'scoped memory for _forward_single.1']
    #allocation5 [shape = 'u8[262144]{0}', space=vmem, size = 0x40000, scoped, tag = 'input window, operand 4, single buffered']
    #allocation6 [shape = 's32[1]{0}', space=sflag, size = 0x4, scoped, tag = 'scoped memory for _forward_single.1']
    #allocation7 [shape = 'u8[262144]{0}', space=vmem, size = 0x40000, scoped, tag = 'input window, operand 5, single buffered']
    #allocation8 [shape = 'u8[4608]{0}', space=vmem, size = 0x1400, scoped, tag = 'input window, operand 6, single buffered']
    #allocation9 [shape = 's32[1]{0}', space=sflag, size = 0x4, scoped, tag = 'scoped memory for _forward_single.1']
    #allocation10 [shape = 'u8[1024]{0}', space=vmem, size = 0x400, scoped, tag = 'output window, operand 0, single buffered']
    %12 = vsyncpa [#allocation3], 0
    %13 = vsyncpa [#allocation6], 0
    %14 = vsyncpa [#allocation9], 0
    %15 = vsyncpa [#allocation4], 0
    // Predicated region
    $region2: #{_forward_single.1} parent=1 // pred_check
      _
    $region3: #{_forward_single.1} parent=1 // pred_check_branch
      %17 = sbr.rel (0) target = $region5
    $region4: #{_forward_single.1} parent=1 // pred_region
      _
    $region5: #{_forward_single.1} parent=1 // pred_fallthru
      _
    // Predicated region
    $region6: #{_forward_single.1} parent=1 // pred_check
      _
    $region7: #{_forward_single.1} parent=1 // pred_check_branch
      %19 = sbr.rel (0) target = $region9
    $region8: #{_forward_single.1} parent=1 // pred_region
      _
    $region9: #{_forward_single.1} parent=1 // pred_fallthru
      _
    // Predicated region
    $region10: #{_forward_single.1} parent=1 // pred_check
      _
    $region11: #{_forward_single.1} parent=1 // pred_check_branch
      %21 = sbr.rel (0) target = $region13
    $region12: #{_forward_single.1} parent=1 // pred_region
      %23 = vsyncadd [#allocation3], 0
      %s24 = sshll.u32 %s2, 4
      %s25 = int_to_ptr.hbm [resolvable:$true] %s24
      %s26 = sshll.u32 [#allocation2], 4
      %s27 = int_to_ptr.vmem [resolvable:$true] %s26
      %32 = dma.hbm_to_vmem [thread:$0]  %s25, 4096, %s27, [#allocation3], 256, 256, 16
    $region13: #{_forward_single.1} parent=1 // pred_fallthru
      _
    // Predicated region
    $region14: #{_forward_single.1} parent=1 // pred_check
      _
    $region15: #{_forward_single.1} parent=1 // pred_check_branch
      %34 = sbr.rel (0) target = $region17
    $region16: #{_forward_single.1} parent=1 // pred_region
      _
    $region17: #{_forward_single.1} parent=1 // pred_fallthru
      _
    // Predicated region
    $region18: #{_forward_single.1} parent=1 // pred_check
      _
    $region19: #{_forward_single.1} parent=1 // pred_check_branch
      %36 = sbr.rel (0) target = $region21
    $region20: #{_forward_single.1} parent=1 // pred_region
      %38 = vsyncadd [#allocation6], 0
      %s39 = sshll.u32 %s4, 4
      %s40 = int_to_ptr.hbm [resolvable:$true] %s39
      %s41 = sshll.u32 [#allocation5], 4
      %s42 = int_to_ptr.vmem [resolvable:$true] %s41
      %47 = dma.hbm_to_vmem [thread:$0]  %s40, 8192, %s42, [#allocation6], 128, 128, 8
    $region21: #{_forward_single.1} parent=1 // pred_fallthru
      _
    // Predicated region
    $region22: #{_forward_single.1} parent=1 // pred_check
      _
    $region23: #{_forward_single.1} parent=1 // pred_check_branch
      %49 = sbr.rel (0) target = $region25
    $region24: #{_forward_single.1} parent=1 // pred_region
      %51 = vsyncadd [#allocation6], 0
      %s52 = sshll.u32 %s5, 4
      %s53 = int_to_ptr.hbm [resolvable:$true] %s52
      %s54 = sshll.u32 [#allocation7], 4
      %s55 = int_to_ptr.vmem [resolvable:$true] %s54
      %60 = dma.hbm_to_vmem [thread:$0]  %s53, 8192, %s55, [#allocation6], 64, 64, 4
    $region25: #{_forward_single.1} parent=1 // pred_fallthru
      _
    // Predicated region
    $region26: #{_forward_single.1} parent=1 // pred_check
      _
    $region27: #{_forward_single.1} parent=1 // pred_check_branch
      %62 = sbr.rel (0) target = $region29
    $region28: #{_forward_single.1} parent=1 // pred_region
      %64 = vsyncadd [#allocation9], 0
      %s66 = sshll.u32 %s6, 4
      %s67 = int_to_ptr.hbm [resolvable:$true] %s66
      %s68 = sshll.u32 [#allocation8], 4
      %s69 = int_to_ptr.vmem [resolvable:$true] %s68
      %71 = dma.hbm_to_vmem [thread:$0]  %s67, 144, %s69, [#allocation9]
    $region29: #{_forward_single.1} parent=1 // pred_fallthru
      _
    // Predicated region
    $region30: #{_forward_single.1} parent=1 // pred_check
      _
    $region31: #{_forward_single.1} parent=1 // pred_check_branch
      %73 = sbr.rel (0) target = $region33
    $region32: #{_forward_single.1} parent=1 // pred_region
      %75 = dma.done [#allocation3], 4096
    $region33: #{_forward_single.1} parent=1 // pred_fallthru
      _
    // Predicated region
    $region34: #{_forward_single.1} parent=1 // pred_check
      _
    $region35: #{_forward_single.1} parent=1 // pred_check_branch
      %77 = sbr.rel (0) target = $region37
    $region36: #{_forward_single.1} parent=1 // pred_region
      %79 = dma.done [#allocation6], 8192
    $region37: #{_forward_single.1} parent=1 // pred_fallthru
      _
    // Predicated region
    $region38: #{_forward_single.1} parent=1 // pred_check
      _
    $region39: #{_forward_single.1} parent=1 // pred_check_branch
      %81 = sbr.rel (0) target = $region41
    $region40: #{_forward_single.1} parent=1 // pred_region
      %83 = dma.done [#allocation6], 8192
    $region41: #{_forward_single.1} parent=1 // pred_fallthru
      _
    // Predicated region
    $region42: #{_forward_single.1} parent=1 // pred_check
      _
    $region43: #{_forward_single.1} parent=1 // pred_check_branch
      %85 = sbr.rel (0) target = $region45
    $region44: #{_forward_single.1} parent=1 // pred_region
      %87 = dma.done [#allocation9], 144
    $region45: #{_forward_single.1} parent=1 // pred_fallthru
      _
    %v88 = vld [vmem:[%s0] sm:$0x1]
    %v89 = vld [vmem:[#allocation2] sm:$0xff]
    %v90 = vld [vmem:[#allocation2 + $0x8] sm:$0xff]
    %v91 = vld [vmem:[#allocation2 + $0x10] sm:$0xff]
    %v92 = vld [vmem:[#allocation2 + $0x18] sm:$0xff]
    %v93 = vld [vmem:[#allocation2 + $0x20] sm:$0xff]
    %v94 = vld [vmem:[#allocation2 + $0x28] sm:$0xff]
    %v95 = vld [vmem:[#allocation2 + $0x30] sm:$0xff]
    %v96 = vld [vmem:[#allocation2 + $0x38] sm:$0xff]
    %v97 = vld [vmem:[#allocation2 + $0x40] sm:$0xff]
    %v98 = vld [vmem:[#allocation2 + $0x48] sm:$0xff]
    %v99 = vld [vmem:[#allocation2 + $0x50] sm:$0xff]
    %v100 = vld [vmem:[#allocation2 + $0x58] sm:$0xff]
    %v101 = vld [vmem:[#allocation2 + $0x60] sm:$0xff]
    %v102 = vld [vmem:[#allocation2 + $0x68] sm:$0xff]
    %v103 = vld [vmem:[#allocation2 + $0x70] sm:$0xff]
    %v104 = vld [vmem:[#allocation2 + $0x78] sm:$0xff]
    %v105 = vld [vmem:[#allocation2 + $0x80] sm:$0xff]
    %v106 = vld [vmem:[#allocation2 + $0x88] sm:$0xff]
    %v107 = vld [vmem:[#allocation2 + $0x90] sm:$0xff]
    %v108 = vld [vmem:[#allocation2 + $0x98] sm:$0xff]
    %v109 = vld [vmem:[#allocation2 + $0xa0] sm:$0xff]
    %v110 = vld [vmem:[#allocation2 + $0xa8] sm:$0xff]
    %v111 = vld [vmem:[#allocation2 + $0xb0] sm:$0xff]
    %v112 = vld [vmem:[#allocation2 + $0xb8] sm:$0xff]
    %v113 = vld [vmem:[#allocation2 + $0xc0] sm:$0xff]
    %v114 = vld [vmem:[#allocation2 + $0xc8] sm:$0xff]
    %v115 = vld [vmem:[#allocation2 + $0xd0] sm:$0xff]
    %v116 = vld [vmem:[#allocation2 + $0xd8] sm:$0xff]
    %v117 = vld [vmem:[#allocation2 + $0xe0] sm:$0xff]
    %v118 = vld [vmem:[#allocation2 + $0xe8] sm:$0xff]
    %v119 = vld [vmem:[#allocation2 + $0xf0] sm:$0xff]
    %v120 = vld [vmem:[#allocation2 + $0xf8] sm:$0xff]
    %v121 = vld [vmem:[%s3] sm:$0xf]
    %v123 = vperm.slane %v121, 0
    %v124 = vperm.slane %v121, 1
    %v125 = vperm.slane %v121, 2
    %v126 = vperm.slane %v121, 3
    %v163 = vunpack.c.l.b16 %v89
    %v164 = vunpack.c.h.b16 %v89
    %v165 = vunpack.c.l.b16 %v90
    %v166 = vunpack.c.h.b16 %v90
    %v167 = vunpack.c.l.b16 %v91
    %v168 = vunpack.c.h.b16 %v91
    %v169 = vunpack.c.l.b16 %v92
    %v170 = vunpack.c.h.b16 %v92
    %v171 = vunpack.c.l.b16 %v93
    %v172 = vunpack.c.h.b16 %v93
    %v173 = vunpack.c.l.b16 %v94
    %v174 = vunpack.c.h.b16 %v94
    %v175 = vunpack.c.l.b16 %v95
    %v176 = vunpack.c.h.b16 %v95
    %v177 = vunpack.c.l.b16 %v96
    %v178 = vunpack.c.h.b16 %v96
    %v179 = vunpack.c.l.b16 %v97
    %v180 = vunpack.c.h.b16 %v97
    %v181 = vunpack.c.l.b16 %v98
    %v182 = vunpack.c.h.b16 %v98
    %v183 = vunpack.c.l.b16 %v99
    %v184 = vunpack.c.h.b16 %v99
    %v185 = vunpack.c.l.b16 %v100
    %v186 = vunpack.c.h.b16 %v100
    %v187 = vunpack.c.l.b16 %v101
    %v188 = vunpack.c.h.b16 %v101
    %v189 = vunpack.c.l.b16 %v102
    %v190 = vunpack.c.h.b16 %v102
    %v191 = vunpack.c.l.b16 %v103
    %v192 = vunpack.c.h.b16 %v103
    %v193 = vunpack.c.l.b16 %v104
    %v194 = vunpack.c.h.b16 %v104
    %v195 = vunpack.c.l.b16 %v105
    %v196 = vunpack.c.h.b16 %v105
    %v197 = vunpack.c.l.b16 %v106
    %v198 = vunpack.c.h.b16 %v106
    %v199 = vunpack.c.l.b16 %v107
    %v200 = vunpack.c.h.b16 %v107
    %v201 = vunpack.c.l.b16 %v108
    %v202 = vunpack.c.h.b16 %v108
    %v203 = vunpack.c.l.b16 %v109
    %v204 = vunpack.c.h.b16 %v109
    %v205 = vunpack.c.l.b16 %v110
    %v206 = vunpack.c.h.b16 %v110
    %v207 = vunpack.c.l.b16 %v111
    %v208 = vunpack.c.h.b16 %v111
    %v209 = vunpack.c.l.b16 %v112
    %v210 = vunpack.c.h.b16 %v112
    %v211 = vunpack.c.l.b16 %v113
    %v212 = vunpack.c.h.b16 %v113
    %v213 = vunpack.c.l.b16 %v114
    %v214 = vunpack.c.h.b16 %v114
    %v215 = vunpack.c.l.b16 %v115
    %v216 = vunpack.c.h.b16 %v115
    %v217 = vunpack.c.l.b16 %v116
    %v218 = vunpack.c.h.b16 %v116
    %v219 = vunpack.c.l.b16 %v117
    %v220 = vunpack.c.h.b16 %v117
    %v221 = vunpack.c.l.b16 %v118
    %v222 = vunpack.c.h.b16 %v118
    %v223 = vunpack.c.l.b16 %v119
    %v224 = vunpack.c.h.b16 %v119
    %v225 = vunpack.c.l.b16 %v120
    %v226 = vunpack.c.h.b16 %v120
    %v227 = vpack.c.b16 %v167, %v163
    %v228 = vpack.c.b16 %v168, %v164
    %v229 = vpack.c.b16 %v169, %v165
    %v230 = vpack.c.b16 %v170, %v166
    %v231 = vpack.c.b16 %v175, %v171
    %v232 = vpack.c.b16 %v176, %v172
    %v233 = vpack.c.b16 %v177, %v173
    %v234 = vpack.c.b16 %v178, %v174
    %v235 = vpack.c.b16 %v183, %v179
    %v236 = vpack.c.b16 %v184, %v180
    %v237 = vpack.c.b16 %v185, %v181
    %v238 = vpack.c.b16 %v186, %v182
    %v239 = vpack.c.b16 %v191, %v187
    %v240 = vpack.c.b16 %v192, %v188
    %v241 = vpack.c.b16 %v193, %v189
    %v242 = vpack.c.b16 %v194, %v190
    %v243 = vpack.c.b16 %v199, %v195
    %v244 = vpack.c.b16 %v200, %v196
    %v245 = vpack.c.b16 %v201, %v197
    %v246 = vpack.c.b16 %v202, %v198
    %v247 = vpack.c.b16 %v207, %v203
    %v248 = vpack.c.b16 %v208, %v204
    %v249 = vpack.c.b16 %v209, %v205
    %v250 = vpack.c.b16 %v210, %v206
    %v251 = vpack.c.b16 %v215, %v211
    %v252 = vpack.c.b16 %v216, %v212
    %v253 = vpack.c.b16 %v217, %v213
    %v254 = vpack.c.b16 %v218, %v214
    %v255 = vpack.c.b16 %v223, %v219
    %v256 = vpack.c.b16 %v224, %v220
    %v257 = vpack.c.b16 %v225, %v221
    %v258 = vpack.c.b16 %v226, %v222
    %291 = vmatpush.bf16.msra.mxu0 %v255
    %292 = vmatpush.bf16.msra.mxu0 %v251
    %293 = vmatpush.bf16.msra.mxu0 %v247
    %294 = vmatpush.bf16.msra.mxu0 %v243
    %295 = vmatpush.bf16.msra.mxu0 %v239
    %296 = vmatpush.bf16.msra.mxu0 %v235
    %297 = vmatpush.bf16.msra.mxu0 %v231
    %298 = vmatpush.bf16.msra.mxu0 %v227
    %299 = vmatmul.bf16.gmra.mxu0 %v88
    %v300 = vpop.f32.mrf.mxu0
    %v301 = vadd.f32 %v123, %v300
    %v302 = vpop.f32.mrf.mxu0
    %303 = vdwg.mxu0
    %304 = vmatpush.bf16.msra.mxu0 %v256
    %305 = vmatpush.bf16.msra.mxu0 %v252
    %306 = vmatpush.bf16.msra.mxu0 %v248
    %307 = vmatpush.bf16.msra.mxu0 %v244
    %308 = vmatpush.bf16.msra.mxu0 %v240
    %309 = vmatpush.bf16.msra.mxu0 %v236
    %310 = vmatpush.bf16.msra.mxu0 %v232
    %311 = vmatpush.bf16.msra.mxu0 %v228
    %312 = vmatmul.bf16.gmra.mxu0 %v88
    %v313 = vpop.f32.mrf.mxu0
    %v314 = vadd.f32 %v124, %v313
    %v315 = vpop.f32.mrf.mxu0
    %316 = vdwg.mxu0
    %317 = vmatpush.bf16.msra.mxu0 %v257
    %318 = vmatpush.bf16.msra.mxu0 %v253
    %319 = vmatpush.bf16.msra.mxu0 %v249
    %320 = vmatpush.bf16.msra.mxu0 %v245
    %321 = vmatpush.bf16.msra.mxu0 %v241
    %322 = vmatpush.bf16.msra.mxu0 %v237
    %323 = vmatpush.bf16.msra.mxu0 %v233
    %324 = vmatpush.bf16.msra.mxu0 %v229
    %325 = vmatmul.bf16.gmra.mxu0 %v88
    %v326 = vpop.f32.mrf.mxu0
    %v327 = vadd.f32 %v125, %v326
    %v328 = vpop.f32.mrf.mxu0
    %329 = vdwg.mxu0
    %330 = vmatpush.bf16.msra.mxu0 %v258
    %331 = vmatpush.bf16.msra.mxu0 %v254
    %332 = vmatpush.bf16.msra.mxu0 %v250
    %333 = vmatpush.bf16.msra.mxu0 %v246
    %334 = vmatpush.bf16.msra.mxu0 %v242
    %335 = vmatpush.bf16.msra.mxu0 %v238
    %336 = vmatpush.bf16.msra.mxu0 %v234
    %337 = vmatpush.bf16.msra.mxu0 %v230
    %338 = vmatmul.bf16.gmra.mxu0 %v88
    %v339 = vpop.f32.mrf.mxu0
    %v340 = vadd.f32 %v126, %v339
    %v341 = vpop.f32.mrf.mxu0
    %342 = vdwg.mxu0
    %v343 = vmax.f32 %v301, 0.0
    %v344 = vmax.f32 %v314, 0.0
    %v345 = vmax.f32 %v327, 0.0
    %v346 = vmax.f32 %v340, 0.0
    %v347 = vpack.c.bf16 %v343, %v343
    %v348 = vpack.c.bf16 %v344, %v344
    %v349 = vpack.c.bf16 %v345, %v345
    %v350 = vpack.c.bf16 %v346, %v346
    %v351 = vld [vmem:[#allocation5] sm:$0xff]
    %v352 = vld [vmem:[#allocation5 + $0x8] sm:$0xff]
    %v353 = vld [vmem:[#allocation5 + $0x10] sm:$0xff]
    %v354 = vld [vmem:[#allocation5 + $0x18] sm:$0xff]
    %v355 = vld [vmem:[#allocation5 + $0x20] sm:$0xff]
    %v356 = vld [vmem:[#allocation5 + $0x28] sm:$0xff]
    %v357 = vld [vmem:[#allocation5 + $0x30] sm:$0xff]
    %v358 = vld [vmem:[#allocation5 + $0x38] sm:$0xff]
    %v359 = vld [vmem:[#allocation5 + $0x40] sm:$0xff]
    %v360 = vld [vmem:[#allocation5 + $0x48] sm:$0xff]
    %v361 = vld [vmem:[#allocation5 + $0x50] sm:$0xff]
    %v362 = vld [vmem:[#allocation5 + $0x58] sm:$0xff]
    %v363 = vld [vmem:[#allocation5 + $0x60] sm:$0xff]
    %v364 = vld [vmem:[#allocation5 + $0x68] sm:$0xff]
    %v365 = vld [vmem:[#allocation5 + $0x70] sm:$0xff]
    %v366 = vld [vmem:[#allocation5 + $0x78] sm:$0xff]
    %v367 = vld [vmem:[#allocation5 + $0x80] sm:$0xff]
    %v368 = vld [vmem:[#allocation5 + $0x88] sm:$0xff]
    %v369 = vld [vmem:[#allocation5 + $0x90] sm:$0xff]
    %v370 = vld [vmem:[#allocation5 + $0x98] sm:$0xff]
    %v371 = vld [vmem:[#allocation5 + $0xa0] sm:$0xff]
    %v372 = vld [vmem:[#allocation5 + $0xa8] sm:$0xff]
    %v373 = vld [vmem:[#allocation5 + $0xb0] sm:$0xff]
    %v374 = vld [vmem:[#allocation5 + $0xb8] sm:$0xff]
    %v375 = vld [vmem:[#allocation5 + $0xc0] sm:$0xff]
    %v376 = vld [vmem:[#allocation5 + $0xc8] sm:$0xff]
    %v377 = vld [vmem:[#allocation5 + $0xd0] sm:$0xff]
    %v378 = vld [vmem:[#allocation5 + $0xd8] sm:$0xff]
    %v379 = vld [vmem:[#allocation5 + $0xe0] sm:$0xff]
    %v380 = vld [vmem:[#allocation5 + $0xe8] sm:$0xff]
    %v381 = vld [vmem:[#allocation5 + $0xf0] sm:$0xff]
    %v382 = vld [vmem:[#allocation5 + $0xf8] sm:$0xff]
    %v383 = vld [vmem:[#allocation5 + $0x100] sm:$0xff]
    %v384 = vld [vmem:[#allocation5 + $0x108] sm:$0xff]
    %v385 = vld [vmem:[#allocation5 + $0x110] sm:$0xff]
    %v386 = vld [vmem:[#allocation5 + $0x118] sm:$0xff]
    %v387 = vld [vmem:[#allocation5 + $0x120] sm:$0xff]
    %v388 = vld [vmem:[#allocation5 + $0x128] sm:$0xff]
    %v389 = vld [vmem:[#allocation5 + $0x130] sm:$0xff]
    %v390 = vld [vmem:[#allocation5 + $0x138] sm:$0xff]
    %v391 = vld [vmem:[#allocation5 + $0x140] sm:$0xff]
    %v392 = vld [vmem:[#allocation5 + $0x148] sm:$0xff]
    %v393 = vld [vmem:[#allocation5 + $0x150] sm:$0xff]
    %v394 = vld [vmem:[#allocation5 + $0x158] sm:$0xff]
    %v395 = vld [vmem:[#allocation5 + $0x160] sm:$0xff]
    %v396 = vld [vmem:[#allocation5 + $0x168] sm:$0xff]
    %v397 = vld [vmem:[#allocation5 + $0x170] sm:$0xff]
    %v398 = vld [vmem:[#allocation5 + $0x178] sm:$0xff]
    %v399 = vld [vmem:[#allocation5 + $0x180] sm:$0xff]
    %v400 = vld [vmem:[#allocation5 + $0x188] sm:$0xff]
    %v401 = vld [vmem:[#allocation5 + $0x190] sm:$0xff]
    %v402 = vld [vmem:[#allocation5 + $0x198] sm:$0xff]
    %v403 = vld [vmem:[#allocation5 + $0x1a0] sm:$0xff]
    %v404 = vld [vmem:[#allocation5 + $0x1a8] sm:$0xff]
    %v405 = vld [vmem:[#allocation5 + $0x1b0] sm:$0xff]
    %v406 = vld [vmem:[#allocation5 + $0x1b8] sm:$0xff]
    %v407 = vld [vmem:[#allocation5 + $0x1c0] sm:$0xff]
    %v408 = vld [vmem:[#allocation5 + $0x1c8] sm:$0xff]
    %v409 = vld [vmem:[#allocation5 + $0x1d0] sm:$0xff]
    %v410 = vld [vmem:[#allocation5 + $0x1d8] sm:$0xff]
    %v411 = vld [vmem:[#allocation5 + $0x1e0] sm:$0xff]
    %v412 = vld [vmem:[#allocation5 + $0x1e8] sm:$0xff]
    %v413 = vld [vmem:[#allocation5 + $0x1f0] sm:$0xff]
    %v414 = vld [vmem:[#allocation5 + $0x1f8] sm:$0xff]
    %v415 = vld [vmem:[#allocation8] sm:$0x3]
    %v417 = vperm.slane %v415, 0
    %v418 = vperm.slane %v415, 1
    %v485 = vunpack.c.l.b16 %v351
    %v486 = vunpack.c.h.b16 %v351
    %v487 = vunpack.c.l.b16 %v352
    %v488 = vunpack.c.h.b16 %v352
    %v489 = vunpack.c.l.b16 %v353
    %v490 = vunpack.c.h.b16 %v353
    %v491 = vunpack.c.l.b16 %v354
    %v492 = vunpack.c.h.b16 %v354
    %v493 = vunpack.c.l.b16 %v355
    %v494 = vunpack.c.h.b16 %v355
    %v495 = vunpack.c.l.b16 %v356
    %v496 = vunpack.c.h.b16 %v356
    %v497 = vunpack.c.l.b16 %v357
    %v498 = vunpack.c.h.b16 %v357
    %v499 = vunpack.c.l.b16 %v358
    %v500 = vunpack.c.h.b16 %v358
    %v501 = vunpack.c.l.b16 %v359
    %v502 = vunpack.c.h.b16 %v359
    %v503 = vunpack.c.l.b16 %v360
    %v504 = vunpack.c.h.b16 %v360
    %v505 = vunpack.c.l.b16 %v361
    %v506 = vunpack.c.h.b16 %v361
    %v507 = vunpack.c.l.b16 %v362
    %v508 = vunpack.c.h.b16 %v362
    %v509 = vunpack.c.l.b16 %v363
    %v510 = vunpack.c.h.b16 %v363
    %v511 = vunpack.c.l.b16 %v364
    %v512 = vunpack.c.h.b16 %v364
    %v513 = vunpack.c.l.b16 %v365
    %v514 = vunpack.c.h.b16 %v365
    %v515 = vunpack.c.l.b16 %v366
    %v516 = vunpack.c.h.b16 %v366
    %v517 = vunpack.c.l.b16 %v367
    %v518 = vunpack.c.h.b16 %v367
    %v519 = vunpack.c.l.b16 %v368
    %v520 = vunpack.c.h.b16 %v368
    %v521 = vunpack.c.l.b16 %v369
    %v522 = vunpack.c.h.b16 %v369
    %v523 = vunpack.c.l.b16 %v370
    %v524 = vunpack.c.h.b16 %v370
    %v525 = vunpack.c.l.b16 %v371
    %v526 = vunpack.c.h.b16 %v371
    %v527 = vunpack.c.l.b16 %v372
    %v528 = vunpack.c.h.b16 %v372
    %v529 = vunpack.c.l.b16 %v373
    %v530 = vunpack.c.h.b16 %v373
    %v531 = vunpack.c.l.b16 %v374
    %v532 = vunpack.c.h.b16 %v374
    %v533 = vunpack.c.l.b16 %v375
    %v534 = vunpack.c.h.b16 %v375
    %v535 = vunpack.c.l.b16 %v376
    %v536 = vunpack.c.h.b16 %v376
    %v537 = vunpack.c.l.b16 %v377
    %v538 = vunpack.c.h.b16 %v377
    %v539 = vunpack.c.l.b16 %v378
    %v540 = vunpack.c.h.b16 %v378
    %v541 = vunpack.c.l.b16 %v379
    %v542 = vunpack.c.h.b16 %v379
    %v543 = vunpack.c.l.b16 %v380
    %v544 = vunpack.c.h.b16 %v380
    %v545 = vunpack.c.l.b16 %v381
    %v546 = vunpack.c.h.b16 %v381
    %v547 = vunpack.c.l.b16 %v382
    %v548 = vunpack.c.h.b16 %v382
    %v549 = vunpack.c.l.b16 %v383
    %v550 = vunpack.c.h.b16 %v383
    %v551 = vunpack.c.l.b16 %v384
    %v552 = vunpack.c.h.b16 %v384
    %v553 = vunpack.c.l.b16 %v385
    %v554 = vunpack.c.h.b16 %v385
    %v555 = vunpack.c.l.b16 %v386
    %v556 = vunpack.c.h.b16 %v386
    %v557 = vunpack.c.l.b16 %v387
    %v558 = vunpack.c.h.b16 %v387
    %v559 = vunpack.c.l.b16 %v388
    %v560 = vunpack.c.h.b16 %v388
    %v561 = vunpack.c.l.b16 %v389
    %v562 = vunpack.c.h.b16 %v389
    %v563 = vunpack.c.l.b16 %v390
    %v564 = vunpack.c.h.b16 %v390
    %v565 = vunpack.c.l.b16 %v391
    %v566 = vunpack.c.h.b16 %v391
    %v567 = vunpack.c.l.b16 %v392
    %v568 = vunpack.c.h.b16 %v392
    %v569 = vunpack.c.l.b16 %v393
    %v570 = vunpack.c.h.b16 %v393
    %v571 = vunpack.c.l.b16 %v394
    %v572 = vunpack.c.h.b16 %v394
    %v573 = vunpack.c.l.b16 %v395
    %v574 = vunpack.c.h.b16 %v395
    %v575 = vunpack.c.l.b16 %v396
    %v576 = vunpack.c.h.b16 %v396
    %v577 = vunpack.c.l.b16 %v397
    %v578 = vunpack.c.h.b16 %v397
    %v579 = vunpack.c.l.b16 %v398
    %v580 = vunpack.c.h.b16 %v398
    %v581 = vunpack.c.l.b16 %v399
    %v582 = vunpack.c.h.b16 %v399
    %v583 = vunpack.c.l.b16 %v400
    %v584 = vunpack.c.h.b16 %v400
    %v585 = vunpack.c.l.b16 %v401
    %v586 = vunpack.c.h.b16 %v401
    %v587 = vunpack.c.l.b16 %v402
    %v588 = vunpack.c.h.b16 %v402
    %v589 = vunpack.c.l.b16 %v403
    %v590 = vunpack.c.h.b16 %v403
    %v591 = vunpack.c.l.b16 %v404
    %v592 = vunpack.c.h.b16 %v404
    %v593 = vunpack.c.l.b16 %v405
    %v594 = vunpack.c.h.b16 %v405
    %v595 = vunpack.c.l.b16 %v406
    %v596 = vunpack.c.h.b16 %v406
    %v597 = vunpack.c.l.b16 %v407
    %v598 = vunpack.c.h.b16 %v407
    %v599 = vunpack.c.l.b16 %v408
    %v600 = vunpack.c.h.b16 %v408
    %v601 = vunpack.c.l.b16 %v409
    %v602 = vunpack.c.h.b16 %v409
    %v603 = vunpack.c.l.b16 %v410
    %v604 = vunpack.c.h.b16 %v410
    %v605 = vunpack.c.l.b16 %v411
    %v606 = vunpack.c.h.b16 %v411
    %v607 = vunpack.c.l.b16 %v412
    %v608 = vunpack.c.h.b16 %v412
    %v609 = vunpack.c.l.b16 %v413
    %v610 = vunpack.c.h.b16 %v413
    %v611 = vunpack.c.l.b16 %v414
    %v612 = vunpack.c.h.b16 %v414
    %v613 = vpack.c.b16 %v487, %v485
    %v614 = vpack.c.b16 %v488, %v486
    %v615 = vpack.c.b16 %v491, %v489
    %v616 = vpack.c.b16 %v492, %v490
    %v617 = vpack.c.b16 %v495, %v493
    %v618 = vpack.c.b16 %v496, %v494
    %v619 = vpack.c.b16 %v499, %v497
    %v620 = vpack.c.b16 %v500, %v498
    %v621 = vpack.c.b16 %v503, %v501
    %v622 = vpack.c.b16 %v504, %v502
    %v623 = vpack.c.b16 %v507, %v505
    %v624 = vpack.c.b16 %v508, %v506
    %v625 = vpack.c.b16 %v511, %v509
    %v626 = vpack.c.b16 %v512, %v510
    %v627 = vpack.c.b16 %v515, %v513
    %v628 = vpack.c.b16 %v516, %v514
    %v629 = vpack.c.b16 %v519, %v517
    %v630 = vpack.c.b16 %v520, %v518
    %v631 = vpack.c.b16 %v523, %v521
    %v632 = vpack.c.b16 %v524, %v522
    %v633 = vpack.c.b16 %v527, %v525
    %v634 = vpack.c.b16 %v528, %v526
    %v635 = vpack.c.b16 %v531, %v529
    %v636 = vpack.c.b16 %v532, %v530
    %v637 = vpack.c.b16 %v535, %v533
    %v638 = vpack.c.b16 %v536, %v534
    %v639 = vpack.c.b16 %v539, %v537
    %v640 = vpack.c.b16 %v540, %v538
    %v641 = vpack.c.b16 %v543, %v541
    %v642 = vpack.c.b16 %v544, %v542
    %v643 = vpack.c.b16 %v547, %v545
    %v644 = vpack.c.b16 %v548, %v546
    %v645 = vpack.c.b16 %v551, %v549
    %v646 = vpack.c.b16 %v552, %v550
    %v647 = vpack.c.b16 %v555, %v553
    %v648 = vpack.c.b16 %v556, %v554
    %v649 = vpack.c.b16 %v559, %v557
    %v650 = vpack.c.b16 %v560, %v558
    %v651 = vpack.c.b16 %v563, %v561
    %v652 = vpack.c.b16 %v564, %v562
    %v653 = vpack.c.b16 %v567, %v565
    %v654 = vpack.c.b16 %v568, %v566
    %v655 = vpack.c.b16 %v571, %v569
    %v656 = vpack.c.b16 %v572, %v570
    %v657 = vpack.c.b16 %v575, %v573
    %v658 = vpack.c.b16 %v576, %v574
    %v659 = vpack.c.b16 %v579, %v577
    %v660 = vpack.c.b16 %v580, %v578
    %v661 = vpack.c.b16 %v583, %v581
    %v662 = vpack.c.b16 %v584, %v582
    %v663 = vpack.c.b16 %v587, %v585
    %v664 = vpack.c.b16 %v588, %v586
    %v665 = vpack.c.b16 %v591, %v589
    %v666 = vpack.c.b16 %v592, %v590
    %v667 = vpack.c.b16 %v595, %v593
    %v668 = vpack.c.b16 %v596, %v594
    %v669 = vpack.c.b16 %v599, %v597
    %v670 = vpack.c.b16 %v600, %v598
    %v671 = vpack.c.b16 %v603, %v601
    %v672 = vpack.c.b16 %v604, %v602
    %v673 = vpack.c.b16 %v607, %v605
    %v674 = vpack.c.b16 %v608, %v606
    %v675 = vpack.c.b16 %v611, %v609
    %v676 = vpack.c.b16 %v612, %v610
    %741 = vmatpush.bf16.msra.mxu0 %v627
    %742 = vmatpush.bf16.msra.mxu0 %v625
    %743 = vmatpush.bf16.msra.mxu0 %v623
    %744 = vmatpush.bf16.msra.mxu0 %v621
    %745 = vmatpush.bf16.msra.mxu0 %v619
    %746 = vmatpush.bf16.msra.mxu0 %v617
    %747 = vmatpush.bf16.msra.mxu0 %v615
    %748 = vmatpush.bf16.msra.mxu0 %v613
    %749 = vmatmul.bf16.gmra.mxu0 %v347
    %v750 = vpop.f32.mrf.mxu0
    %v751 = vadd.f32 %v417, %v750
    %v752 = vpop.f32.mrf.mxu0
    %753 = vdwg.mxu0
    %754 = vmatpush.bf16.msra.mxu0 %v643
    %755 = vmatpush.bf16.msra.mxu0 %v641
    %756 = vmatpush.bf16.msra.mxu0 %v639
    %757 = vmatpush.bf16.msra.mxu0 %v637
    %758 = vmatpush.bf16.msra.mxu0 %v635
    %759 = vmatpush.bf16.msra.mxu0 %v633
    %760 = vmatpush.bf16.msra.mxu0 %v631
    %761 = vmatpush.bf16.msra.mxu0 %v629
    %762 = vmatmul.bf16.gmra.mxu0 %v348
    %v763 = vpop.f32.mrf.mxu0
    %v764 = vadd.f32 %v751, %v763
    %v765 = vpop.f32.mrf.mxu0
    %766 = vdwg.mxu0
    %767 = vmatpush.bf16.msra.mxu0 %v659
    %768 = vmatpush.bf16.msra.mxu0 %v657
    %769 = vmatpush.bf16.msra.mxu0 %v655
    %770 = vmatpush.bf16.msra.mxu0 %v653
    %771 = vmatpush.bf16.msra.mxu0 %v651
    %772 = vmatpush.bf16.msra.mxu0 %v649
    %773 = vmatpush.bf16.msra.mxu0 %v647
    %774 = vmatpush.bf16.msra.mxu0 %v645
    %775 = vmatmul.bf16.gmra.mxu0 %v349
    %v776 = vpop.f32.mrf.mxu0
    %v777 = vadd.f32 %v764, %v776
    %v778 = vpop.f32.mrf.mxu0
    %779 = vdwg.mxu0
    %780 = vmatpush.bf16.msra.mxu0 %v675
    %781 = vmatpush.bf16.msra.mxu0 %v673
    %782 = vmatpush.bf16.msra.mxu0 %v671
    %783 = vmatpush.bf16.msra.mxu0 %v669
    %784 = vmatpush.bf16.msra.mxu0 %v667
    %785 = vmatpush.bf16.msra.mxu0 %v665
    %786 = vmatpush.bf16.msra.mxu0 %v663
    %787 = vmatpush.bf16.msra.mxu0 %v661
    %788 = vmatmul.bf16.gmra.mxu0 %v350
    %v789 = vpop.f32.mrf.mxu0
    %v790 = vadd.f32 %v777, %v789
    %v791 = vpop.f32.mrf.mxu0
    %792 = vdwg.mxu0
    %793 = vmatpush.bf16.msra.mxu0 %v628
    %794 = vmatpush.bf16.msra.mxu0 %v626
    %795 = vmatpush.bf16.msra.mxu0 %v624
    %796 = vmatpush.bf16.msra.mxu0 %v622
    %797 = vmatpush.bf16.msra.mxu0 %v620
    %798 = vmatpush.bf16.msra.mxu0 %v618
    %799 = vmatpush.bf16.msra.mxu0 %v616
    %800 = vmatpush.bf16.msra.mxu0 %v614
    %801 = vmatmul.bf16.gmra.mxu0 %v347
    %v802 = vpop.f32.mrf.mxu0
    %v803 = vadd.f32 %v418, %v802
    %v804 = vpop.f32.mrf.mxu0
    %805 = vdwg.mxu0
    %806 = vmatpush.bf16.msra.mxu0 %v644
    %807 = vmatpush.bf16.msra.mxu0 %v642
    %808 = vmatpush.bf16.msra.mxu0 %v640
    %809 = vmatpush.bf16.msra.mxu0 %v638
    %810 = vmatpush.bf16.msra.mxu0 %v636
    %811 = vmatpush.bf16.msra.mxu0 %v634
    %812 = vmatpush.bf16.msra.mxu0 %v632
    %813 = vmatpush.bf16.msra.mxu0 %v630
    %814 = vmatmul.bf16.gmra.mxu0 %v348
    %v815 = vpop.f32.mrf.mxu0
    %v816 = vadd.f32 %v803, %v815
    %v817 = vpop.f32.mrf.mxu0
    %818 = vdwg.mxu0
    %819 = vmatpush.bf16.msra.mxu0 %v660
    %820 = vmatpush.bf16.msra.mxu0 %v658
    %821 = vmatpush.bf16.msra.mxu0 %v656
    %822 = vmatpush.bf16.msra.mxu0 %v654
    %823 = vmatpush.bf16.msra.mxu0 %v652
    %824 = vmatpush.bf16.msra.mxu0 %v650
    %825 = vmatpush.bf16.msra.mxu0 %v648
    %826 = vmatpush.bf16.msra.mxu0 %v646
    %827 = vmatmul.bf16.gmra.mxu0 %v349
    %v828 = vpop.f32.mrf.mxu0
    %v829 = vadd.f32 %v816, %v828
    %v830 = vpop.f32.mrf.mxu0
    %831 = vdwg.mxu0
    %832 = vmatpush.bf16.msra.mxu0 %v676
    %833 = vmatpush.bf16.msra.mxu0 %v674
    %834 = vmatpush.bf16.msra.mxu0 %v672
    %835 = vmatpush.bf16.msra.mxu0 %v670
    %836 = vmatpush.bf16.msra.mxu0 %v668
    %837 = vmatpush.bf16.msra.mxu0 %v666
    %838 = vmatpush.bf16.msra.mxu0 %v664
    %839 = vmatpush.bf16.msra.mxu0 %v662
    %840 = vmatmul.bf16.gmra.mxu0 %v350
    %v841 = vpop.f32.mrf.mxu0
    %v842 = vadd.f32 %v829, %v841
    %v843 = vpop.f32.mrf.mxu0
    %844 = vdwg.mxu0
    %v845 = vmax.f32 %v790, 0.0
    %v846 = vmax.f32 %v842, 0.0
    %v847 = vpack.c.bf16 %v845, %v845
    %v848 = vpack.c.bf16 %v846, %v846
    %v849 = vld [vmem:[#allocation7] sm:$0xf]
    %v850 = vld [vmem:[#allocation7 + $0x4] sm:$0xf]
    %v851 = vld [vmem:[#allocation7 + $0x8] sm:$0xf]
    %v852 = vld [vmem:[#allocation7 + $0xc] sm:$0xf]
    %v853 = vld [vmem:[#allocation7 + $0x10] sm:$0xf]
    %v854 = vld [vmem:[#allocation7 + $0x14] sm:$0xf]
    %v855 = vld [vmem:[#allocation7 + $0x18] sm:$0xf]
    %v856 = vld [vmem:[#allocation7 + $0x1c] sm:$0xf]
    %v857 = vld [vmem:[#allocation7 + $0x20] sm:$0xf]
    %v858 = vld [vmem:[#allocation7 + $0x24] sm:$0xf]
    %v859 = vld [vmem:[#allocation7 + $0x28] sm:$0xf]
    %v860 = vld [vmem:[#allocation7 + $0x2c] sm:$0xf]
    %v861 = vld [vmem:[#allocation7 + $0x30] sm:$0xf]
    %v862 = vld [vmem:[#allocation7 + $0x34] sm:$0xf]
    %v863 = vld [vmem:[#allocation7 + $0x38] sm:$0xf]
    %v864 = vld [vmem:[#allocation7 + $0x3c] sm:$0xf]
    %v865 = vld [vmem:[#allocation7 + $0x40] sm:$0xf]
    %v866 = vld [vmem:[#allocation7 + $0x44] sm:$0xf]
    %v867 = vld [vmem:[#allocation7 + $0x48] sm:$0xf]
    %v868 = vld [vmem:[#allocation7 + $0x4c] sm:$0xf]
    %v869 = vld [vmem:[#allocation7 + $0x50] sm:$0xf]
    %v870 = vld [vmem:[#allocation7 + $0x54] sm:$0xf]
    %v871 = vld [vmem:[#allocation7 + $0x58] sm:$0xf]
    %v872 = vld [vmem:[#allocation7 + $0x5c] sm:$0xf]
    %v873 = vld [vmem:[#allocation7 + $0x60] sm:$0xf]
    %v874 = vld [vmem:[#allocation7 + $0x64] sm:$0xf]
    %v875 = vld [vmem:[#allocation7 + $0x68] sm:$0xf]
    %v876 = vld [vmem:[#allocation7 + $0x6c] sm:$0xf]
    %v877 = vld [vmem:[#allocation7 + $0x70] sm:$0xf]
    %v878 = vld [vmem:[#allocation7 + $0x74] sm:$0xf]
    %v879 = vld [vmem:[#allocation7 + $0x78] sm:$0xf]
    %v880 = vld [vmem:[#allocation7 + $0x7c] sm:$0xf]
    %v881 = vld [vmem:[#allocation8 + $0x2] sm:$0x1]
    %v883 = vperm.slane %v881, 0
    %v917 = vunpack.c.l.b16 %v849
    %v918 = vunpack.c.l.b16 %v850
    %v919 = vunpack.c.l.b16 %v851
    %v920 = vunpack.c.l.b16 %v852
    %v921 = vunpack.c.l.b16 %v853
    %v922 = vunpack.c.l.b16 %v854
    %v923 = vunpack.c.l.b16 %v855
    %v924 = vunpack.c.l.b16 %v856
    %v925 = vunpack.c.l.b16 %v857
    %v926 = vunpack.c.l.b16 %v858
    %v927 = vunpack.c.l.b16 %v859
    %v928 = vunpack.c.l.b16 %v860
    %v929 = vunpack.c.l.b16 %v861
    %v930 = vunpack.c.l.b16 %v862
    %v931 = vunpack.c.l.b16 %v863
    %v932 = vunpack.c.l.b16 %v864
    %v933 = vunpack.c.l.b16 %v865
    %v934 = vunpack.c.l.b16 %v866
    %v935 = vunpack.c.l.b16 %v867
    %v936 = vunpack.c.l.b16 %v868
    %v937 = vunpack.c.l.b16 %v869
    %v938 = vunpack.c.l.b16 %v870
    %v939 = vunpack.c.l.b16 %v871
    %v940 = vunpack.c.l.b16 %v872
    %v941 = vunpack.c.l.b16 %v873
    %v942 = vunpack.c.l.b16 %v874
    %v943 = vunpack.c.l.b16 %v875
    %v944 = vunpack.c.l.b16 %v876
    %v945 = vunpack.c.l.b16 %v877
    %v946 = vunpack.c.l.b16 %v878
    %v947 = vunpack.c.l.b16 %v879
    %v948 = vunpack.c.l.b16 %v880
    %v949 = vpack.c.b16 %v918, %v917
    %v950 = vpack.c.b16 %v920, %v919
    %v951 = vpack.c.b16 %v922, %v921
    %v952 = vpack.c.b16 %v924, %v923
    %v953 = vpack.c.b16 %v926, %v925
    %v954 = vpack.c.b16 %v928, %v927
    %v955 = vpack.c.b16 %v930, %v929
    %v956 = vpack.c.b16 %v932, %v931
    %v957 = vpack.c.b16 %v934, %v933
    %v958 = vpack.c.b16 %v936, %v935
    %v959 = vpack.c.b16 %v938, %v937
    %v960 = vpack.c.b16 %v940, %v939
    %v961 = vpack.c.b16 %v942, %v941
    %v962 = vpack.c.b16 %v944, %v943
    %v963 = vpack.c.b16 %v946, %v945
    %v964 = vpack.c.b16 %v948, %v947
    %981 = vmatpush.bf16.msra.mxu0 %v956
    %982 = vmatpush.bf16.msra.mxu0 %v955
    %983 = vmatpush.bf16.msra.mxu0 %v954
    %984 = vmatpush.bf16.msra.mxu0 %v953
    %985 = vmatpush.bf16.msra.mxu0 %v952
    %986 = vmatpush.bf16.msra.mxu0 %v951
    %987 = vmatpush.bf16.msra.mxu0 %v950
    %988 = vmatpush.bf16.msra.mxu0 %v949
    %989 = vmatmul.bf16.gmra.mxu0 %v847
    %v990 = vpop.f32.mrf.mxu0
    %v991 = vadd.f32 %v883, %v990
    %v992 = vpop.f32.mrf.mxu0
    %993 = vdwg.mxu0
    %994 = vmatpush.bf16.msra.mxu0 %v964
    %995 = vmatpush.bf16.msra.mxu0 %v963
    %996 = vmatpush.bf16.msra.mxu0 %v962
    %997 = vmatpush.bf16.msra.mxu0 %v961
    %998 = vmatpush.bf16.msra.mxu0 %v960
    %999 = vmatpush.bf16.msra.mxu0 %v959
    %1000 = vmatpush.bf16.msra.mxu0 %v958
    %1001 = vmatpush.bf16.msra.mxu0 %v957
    %1002 = vmatmul.bf16.gmra.mxu0 %v848
    %v1003 = vpop.f32.mrf.mxu0
    %v1004 = vadd.f32 %v991, %v1003
    %v1005 = vpop.f32.mrf.mxu0
    %1006 = vdwg.mxu0
    %v1007 = vmax.f32 %v1004, 0.0
    %v1008 = vpack.c.bf16 %v1007, %v1007
    %v1009 = vld [vmem:[#allocation7 + $0x80] sm:$0xf]
    %v1010 = vld [vmem:[#allocation7 + $0x84] sm:$0xf]
    %v1011 = vld [vmem:[#allocation7 + $0x88] sm:$0xf]
    %v1012 = vld [vmem:[#allocation7 + $0x8c] sm:$0xf]
    %v1013 = vld [vmem:[#allocation7 + $0x90] sm:$0xf]
    %v1014 = vld [vmem:[#allocation7 + $0x94] sm:$0xf]
    %v1015 = vld [vmem:[#allocation7 + $0x98] sm:$0xf]
    %v1016 = vld [vmem:[#allocation7 + $0x9c] sm:$0xf]
    %v1017 = vld [vmem:[#allocation7 + $0xa0] sm:$0xf]
    %v1018 = vld [vmem:[#allocation7 + $0xa4] sm:$0xf]
    %v1019 = vld [vmem:[#allocation7 + $0xa8] sm:$0xf]
    %v1020 = vld [vmem:[#allocation7 + $0xac] sm:$0xf]
    %v1021 = vld [vmem:[#allocation7 + $0xb0] sm:$0xf]
    %v1022 = vld [vmem:[#allocation7 + $0xb4] sm:$0xf]
    %v1023 = vld [vmem:[#allocation7 + $0xb8] sm:$0xf]
    %v1024 = vld [vmem:[#allocation7 + $0xbc] sm:$0xf]
    %v1025 = vld [vmem:[#allocation8 + $0x3] sm:$0x1]
    %v1027 = vperm.slane %v1025, 0
    %v1045 = vunpack.c.l.b16 %v1009
    %v1046 = vunpack.c.l.b16 %v1010
    %v1047 = vunpack.c.l.b16 %v1011
    %v1048 = vunpack.c.l.b16 %v1012
    %v1049 = vunpack.c.l.b16 %v1013
    %v1050 = vunpack.c.l.b16 %v1014
    %v1051 = vunpack.c.l.b16 %v1015
    %v1052 = vunpack.c.l.b16 %v1016
    %v1053 = vunpack.c.l.b16 %v1017
    %v1054 = vunpack.c.l.b16 %v1018
    %v1055 = vunpack.c.l.b16 %v1019
    %v1056 = vunpack.c.l.b16 %v1020
    %v1057 = vunpack.c.l.b16 %v1021
    %v1058 = vunpack.c.l.b16 %v1022
    %v1059 = vunpack.c.l.b16 %v1023
    %v1060 = vunpack.c.l.b16 %v1024
    %v1061 = vpack.c.b16 %v1046, %v1045
    %v1062 = vpack.c.b16 %v1048, %v1047
    %v1063 = vpack.c.b16 %v1050, %v1049
    %v1064 = vpack.c.b16 %v1052, %v1051
    %v1065 = vpack.c.b16 %v1054, %v1053
    %v1066 = vpack.c.b16 %v1056, %v1055
    %v1067 = vpack.c.b16 %v1058, %v1057
    %v1068 = vpack.c.b16 %v1060, %v1059
    %1077 = vmatpush.bf16.msra.mxu0 %v1068
    %1078 = vmatpush.bf16.msra.mxu0 %v1067
    %1079 = vmatpush.bf16.msra.mxu0 %v1066
    %1080 = vmatpush.bf16.msra.mxu0 %v1065
    %1081 = vmatpush.bf16.msra.mxu0 %v1064
    %1082 = vmatpush.bf16.msra.mxu0 %v1063
    %1083 = vmatpush.bf16.msra.mxu0 %v1062
    %1084 = vmatpush.bf16.msra.mxu0 %v1061
    %1085 = vmatmul.bf16.gmra.mxu0 %v1008
    %v1086 = vpop.f32.mrf.mxu0
    %v1087 = vadd.f32 %v1027, %v1086
    %v1088 = vpop.f32.mrf.mxu0
    %1089 = vdwg.mxu0
    %v1090 = vmax.f32 %v1087, 0.0
    %v1091 = vpack.c.bf16 %v1090, %v1090
    %v1092 = vld [vmem:[%s1] sm:$0x1]
    %v1093 = vld [vmem:[#allocation7 + $0xc0] sm:$0xf]
    %v1094 = vld [vmem:[#allocation7 + $0xc4] sm:$0xf]
    %v1095 = vld [vmem:[#allocation7 + $0xc8] sm:$0xf]
    %v1096 = vld [vmem:[#allocation7 + $0xcc] sm:$0xf]
    %v1097 = vld [vmem:[#allocation7 + $0xd0] sm:$0xf]
    %v1098 = vld [vmem:[#allocation7 + $0xd4] sm:$0xf]
    %v1099 = vld [vmem:[#allocation7 + $0xd8] sm:$0xf]
    %v1100 = vld [vmem:[#allocation7 + $0xdc] sm:$0xf]
    %v1101 = vld [vmem:[#allocation7 + $0xe0] sm:$0xf]
    %v1102 = vld [vmem:[#allocation7 + $0xe4] sm:$0xf]
    %v1103 = vld [vmem:[#allocation7 + $0xe8] sm:$0xf]
    %v1104 = vld [vmem:[#allocation7 + $0xec] sm:$0xf]
    %v1105 = vld [vmem:[#allocation7 + $0xf0] sm:$0xf]
    %v1106 = vld [vmem:[#allocation7 + $0xf4] sm:$0xf]
    %v1107 = vld [vmem:[#allocation7 + $0xf8] sm:$0xf]
    %v1108 = vld [vmem:[#allocation7 + $0xfc] sm:$0xf]
    %v1109 = vld [vmem:[#allocation8 + $0x4] sm:$0x1]
    %v1111 = vperm.slane %v1109, 0
    %v1129 = vunpack.c.l.b16 %v1093
    %v1130 = vunpack.c.l.b16 %v1094
    %v1131 = vunpack.c.l.b16 %v1095
    %v1132 = vunpack.c.l.b16 %v1096
    %v1133 = vunpack.c.l.b16 %v1097
    %v1134 = vunpack.c.l.b16 %v1098
    %v1135 = vunpack.c.l.b16 %v1099
    %v1136 = vunpack.c.l.b16 %v1100
    %v1137 = vunpack.c.l.b16 %v1101
    %v1138 = vunpack.c.l.b16 %v1102
    %v1139 = vunpack.c.l.b16 %v1103
    %v1140 = vunpack.c.l.b16 %v1104
    %v1141 = vunpack.c.l.b16 %v1105
    %v1142 = vunpack.c.l.b16 %v1106
    %v1143 = vunpack.c.l.b16 %v1107
    %v1144 = vunpack.c.l.b16 %v1108
    %v1145 = vpack.c.b16 %v1130, %v1129
    %v1146 = vpack.c.b16 %v1132, %v1131
    %v1147 = vpack.c.b16 %v1134, %v1133
    %v1148 = vpack.c.b16 %v1136, %v1135
    %v1149 = vpack.c.b16 %v1138, %v1137
    %v1150 = vpack.c.b16 %v1140, %v1139
    %v1151 = vpack.c.b16 %v1142, %v1141
    %v1152 = vpack.c.b16 %v1144, %v1143
    %1161 = vmatpush.bf16.msra.mxu0 %v1152
    %1162 = vmatpush.bf16.msra.mxu0 %v1151
    %1163 = vmatpush.bf16.msra.mxu0 %v1150
    %1164 = vmatpush.bf16.msra.mxu0 %v1149
    %1165 = vmatpush.bf16.msra.mxu0 %v1148
    %1166 = vmatpush.bf16.msra.mxu0 %v1147
    %1167 = vmatpush.bf16.msra.mxu0 %v1146
    %1168 = vmatpush.bf16.msra.mxu0 %v1145
    %1169 = vmatmul.bf16.gmra.mxu0 %v1092
    %v1170 = vpop.f32.mrf.mxu0
    %v1171 = vadd.f32 %v1111, %v1170
    %v1172 = vpop.f32.mrf.mxu0
    %1173 = vdwg.mxu0
    %v1174 = vmax.f32 %v1171, 0.0
    %v1175 = vpack.c.bf16 %v1174, %v1174
    %v1176 = vld [vmem:[#allocation7 + $0x100] sm:$0xf]
    %v1177 = vld [vmem:[#allocation7 + $0x104] sm:$0xf]
    %v1178 = vld [vmem:[#allocation7 + $0x108] sm:$0xf]
    %v1179 = vld [vmem:[#allocation7 + $0x10c] sm:$0xf]
    %v1180 = vld [vmem:[#allocation7 + $0x110] sm:$0xf]
    %v1181 = vld [vmem:[#allocation7 + $0x114] sm:$0xf]
    %v1182 = vld [vmem:[#allocation7 + $0x118] sm:$0xf]
    %v1183 = vld [vmem:[#allocation7 + $0x11c] sm:$0xf]
    %v1184 = vld [vmem:[#allocation7 + $0x120] sm:$0xf]
    %v1185 = vld [vmem:[#allocation7 + $0x124] sm:$0xf]
    %v1186 = vld [vmem:[#allocation7 + $0x128] sm:$0xf]
    %v1187 = vld [vmem:[#allocation7 + $0x12c] sm:$0xf]
    %v1188 = vld [vmem:[#allocation7 + $0x130] sm:$0xf]
    %v1189 = vld [vmem:[#allocation7 + $0x134] sm:$0xf]
    %v1190 = vld [vmem:[#allocation7 + $0x138] sm:$0xf]
    %v1191 = vld [vmem:[#allocation7 + $0x13c] sm:$0xf]
    %v1192 = vld [vmem:[#allocation8 + $0x5] sm:$0x1]
    %v1194 = vperm.slane %v1192, 0
    %v1212 = vunpack.c.l.b16 %v1176
    %v1213 = vunpack.c.l.b16 %v1177
    %v1214 = vunpack.c.l.b16 %v1178
    %v1215 = vunpack.c.l.b16 %v1179
    %v1216 = vunpack.c.l.b16 %v1180
    %v1217 = vunpack.c.l.b16 %v1181
    %v1218 = vunpack.c.l.b16 %v1182
    %v1219 = vunpack.c.l.b16 %v1183
    %v1220 = vunpack.c.l.b16 %v1184
    %v1221 = vunpack.c.l.b16 %v1185
    %v1222 = vunpack.c.l.b16 %v1186
    %v1223 = vunpack.c.l.b16 %v1187
    %v1224 = vunpack.c.l.b16 %v1188
    %v1225 = vunpack.c.l.b16 %v1189
    %v1226 = vunpack.c.l.b16 %v1190
    %v1227 = vunpack.c.l.b16 %v1191
    %v1228 = vpack.c.b16 %v1213, %v1212
    %v1229 = vpack.c.b16 %v1215, %v1214
    %v1230 = vpack.c.b16 %v1217, %v1216
    %v1231 = vpack.c.b16 %v1219, %v1218
    %v1232 = vpack.c.b16 %v1221, %v1220
    %v1233 = vpack.c.b16 %v1223, %v1222
    %v1234 = vpack.c.b16 %v1225, %v1224
    %v1235 = vpack.c.b16 %v1227, %v1226
    %1244 = vmatpush.bf16.msra.mxu0 %v1235
    %1245 = vmatpush.bf16.msra.mxu0 %v1234
    %1246 = vmatpush.bf16.msra.mxu0 %v1233
    %1247 = vmatpush.bf16.msra.mxu0 %v1232
    %1248 = vmatpush.bf16.msra.mxu0 %v1231
    %1249 = vmatpush.bf16.msra.mxu0 %v1230
    %1250 = vmatpush.bf16.msra.mxu0 %v1229
    %1251 = vmatpush.bf16.msra.mxu0 %v1228
    %1252 = vmatmul.bf16.gmra.mxu0 %v1175
    %v1253 = vpop.f32.mrf.mxu0
    %v1254 = vadd.f32 %v1194, %v1253
    %v1255 = vpop.f32.mrf.mxu0
    %1256 = vdwg.mxu0
    %v1257 = vmax.f32 %v1254, 0.0
    %v1258 = vpack.c.bf16 %v1257, %v1257
    %v1259 = vunpack.c.l.bf16 %v1091
    %v1260 = vunpack.c.l.bf16 %v1258
    %v1261 = vadd.f32 %v1259, %v1260
    %v1262 = vpack.c.bf16 %v1261, %v1261
    %v1263 = vld [vmem:[#allocation7 + $0x140] sm:$0xf]
    %v1264 = vld [vmem:[#allocation7 + $0x144] sm:$0xf]
    %v1265 = vld [vmem:[#allocation7 + $0x148] sm:$0xf]
    %v1266 = vld [vmem:[#allocation7 + $0x14c] sm:$0xf]
    %v1267 = vld [vmem:[#allocation7 + $0x150] sm:$0xf]
    %v1268 = vld [vmem:[#allocation7 + $0x154] sm:$0xf]
    %v1269 = vld [vmem:[#allocation7 + $0x158] sm:$0xf]
    %v1270 = vld [vmem:[#allocation7 + $0x15c] sm:$0xf]
    %v1271 = vld [vmem:[#allocation7 + $0x160] sm:$0xf]
    %v1272 = vld [vmem:[#allocation7 + $0x164] sm:$0xf]
    %v1273 = vld [vmem:[#allocation7 + $0x168] sm:$0xf]
    %v1274 = vld [vmem:[#allocation7 + $0x16c] sm:$0xf]
    %v1275 = vld [vmem:[#allocation7 + $0x170] sm:$0xf]
    %v1276 = vld [vmem:[#allocation7 + $0x174] sm:$0xf]
    %v1277 = vld [vmem:[#allocation7 + $0x178] sm:$0xf]
    %v1278 = vld [vmem:[#allocation7 + $0x17c] sm:$0xf]
    %v1279 = vld [vmem:[#allocation8 + $0x6] sm:$0x1]
    %v1281 = vperm.slane %v1279, 0
    %v1299 = vunpack.c.l.b16 %v1263
    %v1300 = vunpack.c.l.b16 %v1264
    %v1301 = vunpack.c.l.b16 %v1265
    %v1302 = vunpack.c.l.b16 %v1266
    %v1303 = vunpack.c.l.b16 %v1267
    %v1304 = vunpack.c.l.b16 %v1268
    %v1305 = vunpack.c.l.b16 %v1269
    %v1306 = vunpack.c.l.b16 %v1270
    %v1307 = vunpack.c.l.b16 %v1271
    %v1308 = vunpack.c.l.b16 %v1272
    %v1309 = vunpack.c.l.b16 %v1273
    %v1310 = vunpack.c.l.b16 %v1274
    %v1311 = vunpack.c.l.b16 %v1275
    %v1312 = vunpack.c.l.b16 %v1276
    %v1313 = vunpack.c.l.b16 %v1277
    %v1314 = vunpack.c.l.b16 %v1278
    %v1315 = vpack.c.b16 %v1300, %v1299
    %v1316 = vpack.c.b16 %v1302, %v1301
    %v1317 = vpack.c.b16 %v1304, %v1303
    %v1318 = vpack.c.b16 %v1306, %v1305
    %v1319 = vpack.c.b16 %v1308, %v1307
    %v1320 = vpack.c.b16 %v1310, %v1309
    %v1321 = vpack.c.b16 %v1312, %v1311
    %v1322 = vpack.c.b16 %v1314, %v1313
    %1331 = vmatpush.bf16.msra.mxu0 %v1322
    %1332 = vmatpush.bf16.msra.mxu0 %v1321
    %1333 = vmatpush.bf16.msra.mxu0 %v1320
    %1334 = vmatpush.bf16.msra.mxu0 %v1319
    %1335 = vmatpush.bf16.msra.mxu0 %v1318
    %1336 = vmatpush.bf16.msra.mxu0 %v1317
    %1337 = vmatpush.bf16.msra.mxu0 %v1316
    %1338 = vmatpush.bf16.msra.mxu0 %v1315
    %1339 = vmatmul.bf16.gmra.mxu0 %v1262
    %v1340 = vpop.f32.mrf.mxu0
    %v1341 = vadd.f32 %v1281, %v1340
    %v1342 = vpop.f32.mrf.mxu0
    %1343 = vdwg.mxu0
    %v1344 = vmax.f32 %v1341, 0.0
    %v1345 = vpack.c.bf16 %v1344, %v1344
    %v1346 = vld [vmem:[#allocation7 + $0x180] sm:$0xf]
    %v1347 = vld [vmem:[#allocation7 + $0x184] sm:$0xf]
    %v1348 = vld [vmem:[#allocation7 + $0x188] sm:$0xf]
    %v1349 = vld [vmem:[#allocation7 + $0x18c] sm:$0xf]
    %v1350 = vld [vmem:[#allocation7 + $0x190] sm:$0xf]
    %v1351 = vld [vmem:[#allocation7 + $0x194] sm:$0xf]
    %v1352 = vld [vmem:[#allocation7 + $0x198] sm:$0xf]
    %v1353 = vld [vmem:[#allocation7 + $0x19c] sm:$0xf]
    %v1354 = vld [vmem:[#allocation7 + $0x1a0] sm:$0xf]
    %v1355 = vld [vmem:[#allocation7 + $0x1a4] sm:$0xf]
    %v1356 = vld [vmem:[#allocation7 + $0x1a8] sm:$0xf]
    %v1357 = vld [vmem:[#allocation7 + $0x1ac] sm:$0xf]
    %v1358 = vld [vmem:[#allocation7 + $0x1b0] sm:$0xf]
    %v1359 = vld [vmem:[#allocation7 + $0x1b4] sm:$0xf]
    %v1360 = vld [vmem:[#allocation7 + $0x1b8] sm:$0xf]
    %v1361 = vld [vmem:[#allocation7 + $0x1bc] sm:$0xf]
    %v1362 = vld [vmem:[#allocation8 + $0x7] sm:$0x1]
    %v1364 = vperm.slane %v1362, 0
    %v1382 = vunpack.c.l.b16 %v1346
    %v1383 = vunpack.c.l.b16 %v1347
    %v1384 = vunpack.c.l.b16 %v1348
    %v1385 = vunpack.c.l.b16 %v1349
    %v1386 = vunpack.c.l.b16 %v1350
    %v1387 = vunpack.c.l.b16 %v1351
    %v1388 = vunpack.c.l.b16 %v1352
    %v1389 = vunpack.c.l.b16 %v1353
    %v1390 = vunpack.c.l.b16 %v1354
    %v1391 = vunpack.c.l.b16 %v1355
    %v1392 = vunpack.c.l.b16 %v1356
    %v1393 = vunpack.c.l.b16 %v1357
    %v1394 = vunpack.c.l.b16 %v1358
    %v1395 = vunpack.c.l.b16 %v1359
    %v1396 = vunpack.c.l.b16 %v1360
    %v1397 = vunpack.c.l.b16 %v1361
    %v1398 = vpack.c.b16 %v1383, %v1382
    %v1399 = vpack.c.b16 %v1385, %v1384
    %v1400 = vpack.c.b16 %v1387, %v1386
    %v1401 = vpack.c.b16 %v1389, %v1388
    %v1402 = vpack.c.b16 %v1391, %v1390
    %v1403 = vpack.c.b16 %v1393, %v1392
    %v1404 = vpack.c.b16 %v1395, %v1394
    %v1405 = vpack.c.b16 %v1397, %v1396
    %1414 = vmatpush.bf16.msra.mxu0 %v1405
    %1415 = vmatpush.bf16.msra.mxu0 %v1404
    %1416 = vmatpush.bf16.msra.mxu0 %v1403
    %1417 = vmatpush.bf16.msra.mxu0 %v1402
    %1418 = vmatpush.bf16.msra.mxu0 %v1401
    %1419 = vmatpush.bf16.msra.mxu0 %v1400
    %1420 = vmatpush.bf16.msra.mxu0 %v1399
    %1421 = vmatpush.bf16.msra.mxu0 %v1398
    %1422 = vmatmul.bf16.gmra.mxu0 %v1345
    %v1423 = vpop.f32.mrf.mxu0
    %v1424 = vadd.f32 %v1364, %v1423
    %v1425 = vpop.f32.mrf.mxu0
    %1426 = vdwg.mxu0
    %v1427 = vmax.f32 %v1424, 0.0
    %v1428 = vpack.c.bf16 %v1427, %v1427
    %v1429 = vld [vmem:[#allocation7 + $0x1c0] sm:$0xf]
    %v1430 = vld [vmem:[#allocation7 + $0x1c4] sm:$0xf]
    %v1431 = vld [vmem:[#allocation7 + $0x1c8] sm:$0xf]
    %v1432 = vld [vmem:[#allocation7 + $0x1cc] sm:$0xf]
    %v1433 = vld [vmem:[#allocation7 + $0x1d0] sm:$0xf]
    %v1434 = vld [vmem:[#allocation7 + $0x1d4] sm:$0xf]
    %v1435 = vld [vmem:[#allocation7 + $0x1d8] sm:$0xf]
    %v1436 = vld [vmem:[#allocation7 + $0x1dc] sm:$0xf]
    %v1437 = vld [vmem:[#allocation7 + $0x1e0] sm:$0xf]
    %v1438 = vld [vmem:[#allocation7 + $0x1e4] sm:$0xf]
    %v1439 = vld [vmem:[#allocation7 + $0x1e8] sm:$0xf]
    %v1440 = vld [vmem:[#allocation7 + $0x1ec] sm:$0xf]
    %v1441 = vld [vmem:[#allocation7 + $0x1f0] sm:$0xf]
    %v1442 = vld [vmem:[#allocation7 + $0x1f4] sm:$0xf]
    %v1443 = vld [vmem:[#allocation7 + $0x1f8] sm:$0xf]
    %v1444 = vld [vmem:[#allocation7 + $0x1fc] sm:$0xf]
    %v1445 = vld [vmem:[#allocation8 + $0x8] sm:$0x1]
    %v1447 = vperm.slane %v1445, 0
    %v1465 = vunpack.c.l.b16 %v1429
    %v1466 = vunpack.c.l.b16 %v1430
    %v1467 = vunpack.c.l.b16 %v1431
    %v1468 = vunpack.c.l.b16 %v1432
    %v1469 = vunpack.c.l.b16 %v1433
    %v1470 = vunpack.c.l.b16 %v1434
    %v1471 = vunpack.c.l.b16 %v1435
    %v1472 = vunpack.c.l.b16 %v1436
    %v1473 = vunpack.c.l.b16 %v1437
    %v1474 = vunpack.c.l.b16 %v1438
    %v1475 = vunpack.c.l.b16 %v1439
    %v1476 = vunpack.c.l.b16 %v1440
    %v1477 = vunpack.c.l.b16 %v1441
    %v1478 = vunpack.c.l.b16 %v1442
    %v1479 = vunpack.c.l.b16 %v1443
    %v1480 = vunpack.c.l.b16 %v1444
    %v1481 = vpack.c.b16 %v1466, %v1465
    %v1482 = vpack.c.b16 %v1468, %v1467
    %v1483 = vpack.c.b16 %v1470, %v1469
    %v1484 = vpack.c.b16 %v1472, %v1471
    %v1485 = vpack.c.b16 %v1474, %v1473
    %v1486 = vpack.c.b16 %v1476, %v1475
    %v1487 = vpack.c.b16 %v1478, %v1477
    %v1488 = vpack.c.b16 %v1480, %v1479
    %1497 = vmatpush.bf16.msra.mxu0 %v1488
    %1498 = vmatpush.bf16.msra.mxu0 %v1487
    %1499 = vmatpush.bf16.msra.mxu0 %v1486
    %1500 = vmatpush.bf16.msra.mxu0 %v1485
    %1501 = vmatpush.bf16.msra.mxu0 %v1484
    %1502 = vmatpush.bf16.msra.mxu0 %v1483
    %1503 = vmatpush.bf16.msra.mxu0 %v1482
    %1504 = vmatpush.bf16.msra.mxu0 %v1481
    %1505 = vmatmul.bf16.gmra.mxu0 %v1428
    %v1506 = vpop.f32.mrf.mxu0
    %v1507 = vadd.f32 %v1447, %v1506
    %v1508 = vpop.f32.mrf.mxu0
    %1509 = vdwg.mxu0
    %v1510 = vtanh.pop %v1507
    %v1511 = vadd.f32 %v1510, 1.0
    %v1512 = vmul.f32 %v1511, 0.5
    %1513 = vst [vmem:[#allocation10] sm:$0x3] %v1512
    // Predicated region
    $region46: #{_forward_single.1} parent=1 // pred_check
      _
    $region47: #{_forward_single.1} parent=1 // pred_check_branch
      %1515 = sbr.rel (0) target = $region49
    $region48: #{_forward_single.1} parent=1 // pred_region
      %1517 = vsyncadd [#allocation4], 0
      %s1519 = sshll.u32 [#allocation10], 4
      %s1520 = int_to_ptr.vmem [resolvable:$true] %s1519
      %s1521 = sshll.u32 %s7, 4
      %s1522 = int_to_ptr.hbm [resolvable:$true] %s1521
      %1524 = dma.vmem_to_hbm [thread:$0]  %s1520, 32, %s1522, [#allocation4]
    $region49: #{_forward_single.1} parent=1 // pred_fallthru
      _
    // Predicated region
    $region50: #{_forward_single.1} parent=1 // pred_check
      _
    $region51: #{_forward_single.1} parent=1 // pred_check_branch
      %1526 = sbr.rel (0) target = $region53
    $region52: #{_forward_single.1} parent=1 // pred_region
      %1528 = dma.done [#allocation4], 32
    $region53: #{_forward_single.1} parent=1 // pred_fallthru
      _
    %1529 = vsyncpa [#allocation3], 1
    %1530 = vsyncpa [#allocation6], 1
    %1531 = vsyncpa [#allocation9], 1
    %1532 = vsyncpa [#allocation4], 1

</llo_original>
